<compile_context>
chip_gen: v5e
topology: v5e:2x2
jax: 0.10.0
libtpu: 0.0.40
codegen_flags: <defaults>
</compile_context>

<pallas_src>
import jax
import jax.numpy as jnp
from jax import lax
from jax.experimental import pallas as pl
from jax.experimental.pallas import tpu as pltpu

BN_EPS = 1e-5
LN_EPS = 1e-5


def cont_embedding_kernel(x_ref, bng_ref, bnb_ref,
                          wih_ref, whh_ref, bih_ref, bhn_ref,
                          lng_ref, lnb_ref,
                          out_ref,
                          hs_s):
    T, B, D = x_ref.shape
    H = out_ref.shape[2]
    GS = whh_ref.shape[1] // 3          # 128-lane-aligned gate stride

    # ---- BatchNorm1d(seq_len-1): training-mode batch stats, fused scale/shift ----
    x = x_ref[...]
    m = jnp.mean(x, axis=(0, 2), keepdims=True)                     # (1, B, 1)
    m2 = jnp.mean(x * x, axis=(0, 2), keepdims=True)
    var = m2 - m * m                                                 # biased variance
    a = bng_ref[...].reshape(1, B, 1) * lax.rsqrt(var + BN_EPS)
    b = bnb_ref[...].reshape(1, B, 1) - m * a
    xn = x * a + b                                                   # (T, B, D)

    # ---- fused input->hidden gates: one MXU matmul over all steps & gates ----
    # (T, B) merge is a leading-dim-only reshape; lane dim D is untouched.  Result stays
    # in vregs; per-step slices below are static and start on sublane-tile boundaries.
    gx = jnp.dot(xn.reshape(T * B, D), wih_ref[...],
                 preferred_element_type=jnp.float32) + bih_ref[...]  # (T*B, 3*GS)

    whh = whh_ref[...]                  # (H, 3*GS)
    bhn = bhn_ref[...]                  # (1, H)

    # ---- GRU recurrence, fully unrolled (T static & small) ----
    h = jnp.zeros((B, H), dtype=jnp.float32)
    for t in range(T):
        gh = jnp.dot(h, whh, preferred_element_type=jnp.float32)    # (B, 3*GS), one push
        gx_t = gx[t * B:(t + 1) * B, :]                              # static (B, 3*GS) slice
        r = jax.nn.sigmoid(gx_t[:, 0:H] + gh[:, 0:H])
        z = jax.nn.sigmoid(gx_t[:, GS:GS + H] + gh[:, GS:GS + H])
        n = jnp.tanh(gx_t[:, 2 * GS:2 * GS + H]
                     + r * (gh[:, 2 * GS:2 * GS + H] + bhn))
        h = n + z * (h - n)                                          # == (1-z)*n + z*h
        hs_s[t] = h

    # ---- LayerNorm(embed_dim): one vectorized pass + one bulk store ----
    hs = hs_s[...]                                                   # (T, B, H)
    mu = jnp.mean(hs, axis=-1, keepdims=True)
    ch = hs - mu
    v = jnp.mean(ch * ch, axis=-1, keepdims=True)
    lng = lng_ref[...].reshape(1, 1, H)
    lnb = lnb_ref[...].reshape(1, 1, H)
    out_ref[...] = (ch * lax.rsqrt(v + LN_EPS) * lng + lnb).astype(out_ref.dtype)


def _pack_gates(mat, H, GS):
    """mat: (3H, X) PyTorch gate-stacked weight [r; z; n].
    Returns (X, 3*GS) with W_g^T in columns [g*GS, g*GS+H), zeros elsewhere, so each gate
    block starts on a 128-lane tile boundary."""
    X = mat.shape[1]
    out = jnp.zeros((X, 3 * GS), mat.dtype)
    for g in range(3):
        out = out.at[:, g * GS:g * GS + H].set(mat[g * H:(g + 1) * H, :].T)
    return out


def _pack_gate_bias(vec, H, GS):
    out = jnp.zeros((1, 3 * GS), vec.dtype)
    for g in range(3):
        out = out.at[0, g * GS:g * GS + H].set(vec[g * H:(g + 1) * H])
    return out


def cont_embedding(x, params):
    """x: (T, B, D) float32. Returns (T, B, H) float32."""
    T, B, D = x.shape
    H = params["ln_gamma"].shape[0]
    GS = ((H + 127) // 128) * 128      # pad each gate block to a 128-lane tile

    wih = _pack_gates(params["w_ih"], H, GS)                         # (D, 3*GS)
    whh = _pack_gates(params["w_hh"], H, GS)                         # (H, 3*GS)
    # Fold r/z hidden biases into the input biases (plain adds on the serial path);
    # keep b_hh[n] separate because the GRU cell multiplies it by r.
    b_ih_fused = params["b_ih"].at[:2 * H].add(params["b_hh"][:2 * H])
    bih = _pack_gate_bias(b_ih_fused, H, GS)                         # (1, 3*GS)
    bhn = params["b_hh"][2 * H:].reshape(1, H)
    bng = params["bn_gamma"].reshape(1, B)
    bnb = params["bn_beta"].reshape(1, B)
    lng = params["ln_gamma"].reshape(1, H)
    lnb = params["ln_beta"].reshape(1, H)

    vmem = pl.BlockSpec(memory_space=pltpu.MemorySpace.VMEM)
    return pl.pallas_call(
        cont_embedding_kernel,
        out_shape=jax.ShapeDtypeStruct((T, B, H), jnp.float32),
        in_specs=[vmem] * 9,
        out_specs=vmem,
        scratch_shapes=[pltpu.VMEM((T, B, H), jnp.float32)],         # hidden states (pre-LN)
    )(x, bng, bnb, wih, whh, bih, bhn, lng, lnb)


def cont_embedding_reference(x, params):
    """Pure-JAX reference matching PyTorch semantics (verification only)."""
    T, B, D = x.shape
    H = params["ln_gamma"].shape[0]
    mean = x.mean(axis=(0, 2), keepdims=True)
    var = ((x - mean) ** 2).mean(axis=(0, 2), keepdims=True)
    xn = (x - mean) / jnp.sqrt(var + BN_EPS)
    xn = xn * params["bn_gamma"].reshape(1, B, 1) + params["bn_beta"].reshape(1, B, 1)

    w_ih, w_hh = params["w_ih"], params["w_hh"]
    b_ih, b_hh = params["b_ih"], params["b_hh"]
    h = jnp.zeros((B, H), jnp.float32)
    outs = []
    for t in range(T):
        gi = xn[t] @ w_ih.T + b_ih
        gh = h @ w_hh.T + b_hh
        r = jax.nn.sigmoid(gi[:, :H] + gh[:, :H])
        z = jax.nn.sigmoid(gi[:, H:2 * H] + gh[:, H:2 * H])
        n = jnp.tanh(gi[:, 2 * H:] + r * gh[:, 2 * H:])
        h = (1.0 - z) * n + z * h
        outs.append(h)
    y = jnp.stack(outs, axis=0)                                      # (T, B, H)
    mu = y.mean(axis=-1, keepdims=True)
    v = ((y - mu) ** 2).mean(axis=-1, keepdims=True)
    return (y - mu) / jnp.sqrt(v + LN_EPS) * params["ln_gamma"] + params["ln_beta"]


if __name__ == "__main__":
    # Small shapes consistent with the module: input_dim=16, embed_dim=32, seq_len=9, batch=6.
    input_dim, embed_dim, seq_len, batch = 16, 32, 9, 6
    T, B, D, H = batch, seq_len - 1, input_dim, embed_dim

    key = jax.random.PRNGKey(0)
    keys = jax.random.split(key, 10)
    k = 1.0 / jnp.sqrt(jnp.float32(H))
    params = {
        "bn_gamma": jax.random.uniform(keys[0], (B,), jnp.float32, 0.8, 1.2),
        "bn_beta": jax.random.uniform(keys[1], (B,), jnp.float32, -0.1, 0.1),
        "w_ih": jax.random.uniform(keys[2], (3 * H, D), jnp.float32, -k, k),
        "w_hh": jax.random.uniform(keys[3], (3 * H, H), jnp.float32, -k, k),
        "b_ih": jax.random.uniform(keys[4], (3 * H,), jnp.float32, -k, k),
        "b_hh": jax.random.uniform(keys[5], (3 * H,), jnp.float32, -k, k),
        "ln_gamma": jax.random.uniform(keys[6], (H,), jnp.float32, 0.8, 1.2),
        "ln_beta": jax.random.uniform(keys[7], (H,), jnp.float32, -0.1, 0.1),
    }
    x = jax.random.normal(keys[8], (T, B, D), jnp.float32)

    out = cont_embedding(x, params)
    out = jax.block_until_ready(out)

    ref = cont_embedding_reference(x, params)
    if not jnp.allclose(out, ref, atol=1e-2, rtol=1e-2):
        raise AssertionError("Pallas kernel output does not match reference")
    print("KERNEL_OK")
</pallas_src>

<mosaic_0001>
module attributes {stable_mosaic.version = 11 : i64} {
  func.func @cont_embedding_kernel(%arg0: memref<6x8x16xf32, #tpu.memory_space<vmem>>, %arg1: memref<1x8xf32, #tpu.memory_space<vmem>>, %arg2: memref<1x8xf32, #tpu.memory_space<vmem>>, %arg3: memref<16x384xf32, #tpu.memory_space<vmem>>, %arg4: memref<32x384xf32, #tpu.memory_space<vmem>>, %arg5: memref<1x384xf32, #tpu.memory_space<vmem>>, %arg6: memref<1x32xf32, #tpu.memory_space<vmem>>, %arg7: memref<1x32xf32, #tpu.memory_space<vmem>>, %arg8: memref<1x32xf32, #tpu.memory_space<vmem>>, %arg9: memref<6x8x32xf32, #tpu.memory_space<vmem>>, %arg10: memref<6x8x32xf32, #tpu.memory_space<vmem>>) attributes {dimension_semantics = [], scalar_prefetch = 0 : i64, scratch_operands = 1 : i64, tpu.core_type = #tpu.core_type<tc>} {
    %c0 = arith.constant 0 : index
    %c0_0 = arith.constant 0 : index
    %c0_1 = arith.constant 0 : index
    %0 = vector.load %arg0[%c0, %c0_0, %c0_1] : memref<6x8x16xf32, #tpu.memory_space<vmem>>, vector<6x8x16xf32>
    %cst = arith.constant dense<0.000000e+00> : vector<8xf32>
    %1 = vector.multi_reduction <add>, %0, %cst [0, 2] : vector<6x8x16xf32> to vector<8xf32>
    %2 = vector.shape_cast %1 : vector<8xf32> to vector<1x8x1xf32>
    %cst_2 = arith.constant 9.600000e+01 : f32
    %3 = vector.broadcast %cst_2 : f32 to vector<1x8x1xf32>
    %4 = arith.divf %2, %3 : vector<1x8x1xf32>
    %5 = arith.mulf %0, %0 : vector<6x8x16xf32>
    %cst_3 = arith.constant dense<0.000000e+00> : vector<8xf32>
    %6 = vector.multi_reduction <add>, %5, %cst_3 [0, 2] : vector<6x8x16xf32> to vector<8xf32>
    %7 = vector.shape_cast %6 : vector<8xf32> to vector<1x8x1xf32>
    %cst_4 = arith.constant 9.600000e+01 : f32
    %8 = vector.broadcast %cst_4 : f32 to vector<1x8x1xf32>
    %9 = arith.divf %7, %8 : vector<1x8x1xf32>
    %10 = arith.mulf %4, %4 : vector<1x8x1xf32>
    %11 = arith.subf %9, %10 : vector<1x8x1xf32>
    %c0_5 = arith.constant 0 : index
    %c0_6 = arith.constant 0 : index
    %12 = vector.load %arg1[%c0_5, %c0_6] : memref<1x8xf32, #tpu.memory_space<vmem>>, vector<1x8xf32>
    %13 = vector.shape_cast %12 : vector<1x8xf32> to vector<1x8x1xf32>
    %cst_7 = arith.constant 9.99999974E-6 : f32
    %14 = vector.broadcast %cst_7 : f32 to vector<1x8x1xf32>
    %15 = arith.addf %11, %14 : vector<1x8x1xf32>
    %16 = math.rsqrt %15 : vector<1x8x1xf32>
    %17 = arith.mulf %13, %16 : vector<1x8x1xf32>
    %c0_8 = arith.constant 0 : index
    %c0_9 = arith.constant 0 : index
    %18 = vector.load %arg2[%c0_8, %c0_9] : memref<1x8xf32, #tpu.memory_space<vmem>>, vector<1x8xf32>
    %19 = vector.shape_cast %18 : vector<1x8xf32> to vector<1x8x1xf32>
    %20 = arith.mulf %4, %17 : vector<1x8x1xf32>
    %21 = arith.subf %19, %20 : vector<1x8x1xf32>
    %22 = vector.broadcast %17 : vector<1x8x1xf32> to vector<6x8x16xf32>
    %23 = arith.mulf %0, %22 : vector<6x8x16xf32>
    %24 = vector.broadcast %21 : vector<1x8x1xf32> to vector<6x8x16xf32>
    %25 = arith.addf %23, %24 : vector<6x8x16xf32>
    %26 = vector.shape_cast %25 : vector<6x8x16xf32> to vector<48x16xf32>
    %c0_10 = arith.constant 0 : index
    %c0_11 = arith.constant 0 : index
    %27 = vector.load %arg3[%c0_10, %c0_11] : memref<16x384xf32, #tpu.memory_space<vmem>>, vector<16x384xf32>
    %cst_12 = arith.constant dense<0.000000e+00> : vector<48x384xf32>
    %28 = tpu.matmul %26, %27, %cst_12 {dimension_numbers = #tpu.dot_dimension_numbers<[1], [0], [0], [1], [0, 0, 1, 1], [], []>} : vector<48x16xf32>, vector<16x384xf32>, vector<48x384xf32> -> vector<48x384xf32>
    %c0_13 = arith.constant 0 : index
    %c0_14 = arith.constant 0 : index
    %29 = vector.load %arg5[%c0_13, %c0_14] : memref<1x384xf32, #tpu.memory_space<vmem>>, vector<1x384xf32>
    %30 = vector.broadcast %29 : vector<1x384xf32> to vector<48x384xf32>
    %31 = arith.addf %28, %30 : vector<48x384xf32>
    %c0_15 = arith.constant 0 : index
    %c0_16 = arith.constant 0 : index
    %32 = vector.load %arg4[%c0_15, %c0_16] : memref<32x384xf32, #tpu.memory_space<vmem>>, vector<32x384xf32>
    %c0_17 = arith.constant 0 : index
    %c0_18 = arith.constant 0 : index
    %33 = vector.load %arg6[%c0_17, %c0_18] : memref<1x32xf32, #tpu.memory_space<vmem>>, vector<1x32xf32>
    %cst_19 = arith.constant 0.000000e+00 : f32
    %34 = vector.broadcast %cst_19 : f32 to vector<8x32xf32>
    %cst_20 = arith.constant dense<0.000000e+00> : vector<8x384xf32>
    %35 = tpu.matmul %34, %32, %cst_20 {dimension_numbers = #tpu.dot_dimension_numbers<[1], [0], [0], [1], [0, 0, 1, 1], [], []>} : vector<8x32xf32>, vector<32x384xf32>, vector<8x384xf32> -> vector<8x384xf32>
    %36 = vector.extract_strided_slice %31 {offsets = [0, 0], sizes = [8, 384], strides = [1, 1]} : vector<48x384xf32> to vector<8x384xf32>
    %37 = vector.extract_strided_slice %36 {offsets = [0, 0], sizes = [8, 32], strides = [1, 1]} : vector<8x384xf32> to vector<8x32xf32>
    %38 = vector.extract_strided_slice %35 {offsets = [0, 0], sizes = [8, 32], strides = [1, 1]} : vector<8x384xf32> to vector<8x32xf32>
    %39 = arith.addf %37, %38 : vector<8x32xf32>
    %40 = arith.negf %39 : vector<8x32xf32>
    %41 = math.exp %40 : vector<8x32xf32>
    %cst_21 = arith.constant 1.000000e+00 : f32
    %42 = vector.broadcast %cst_21 : f32 to vector<8x32xf32>
    %43 = arith.addf %42, %41 : vector<8x32xf32>
    %44 = arith.divf %42, %43 : vector<8x32xf32>
    %45 = vector.extract_strided_slice %36 {offsets = [0, 128], sizes = [8, 32], strides = [1, 1]} : vector<8x384xf32> to vector<8x32xf32>
    %46 = vector.extract_strided_slice %35 {offsets = [0, 128], sizes = [8, 32], strides = [1, 1]} : vector<8x384xf32> to vector<8x32xf32>
    %47 = arith.addf %45, %46 : vector<8x32xf32>
    %48 = arith.negf %47 : vector<8x32xf32>
    %49 = math.exp %48 : vector<8x32xf32>
    %cst_22 = arith.constant 1.000000e+00 : f32
    %50 = vector.broadcast %cst_22 : f32 to vector<8x32xf32>
    %51 = arith.addf %50, %49 : vector<8x32xf32>
    %52 = arith.divf %50, %51 : vector<8x32xf32>
    %53 = vector.extract_strided_slice %36 {offsets = [0, 256], sizes = [8, 32], strides = [1, 1]} : vector<8x384xf32> to vector<8x32xf32>
    %54 = vector.extract_strided_slice %35 {offsets = [0, 256], sizes = [8, 32], strides = [1, 1]} : vector<8x384xf32> to vector<8x32xf32>
    %55 = vector.broadcast %33 : vector<1x32xf32> to vector<8x32xf32>
    %56 = arith.addf %54, %55 : vector<8x32xf32>
    %57 = arith.mulf %44, %56 : vector<8x32xf32>
    %58 = arith.addf %53, %57 : vector<8x32xf32>
    %59 = math.tanh %58 : vector<8x32xf32>
    %60 = arith.subf %34, %59 : vector<8x32xf32>
    %61 = arith.mulf %52, %60 : vector<8x32xf32>
    %62 = arith.addf %59, %61 : vector<8x32xf32>
    %c0_23 = arith.constant 0 : index
    %c0_24 = arith.constant 0 : index
    %c0_25 = arith.constant 0 : index
    %63 = vector.load %arg10[%c0_23, %c0_24, %c0_25] : memref<6x8x32xf32, #tpu.memory_space<vmem>>, vector<1x8x32xf32>
    %64 = vector.shape_cast %63 : vector<1x8x32xf32> to vector<8x32xf32>
    %65 = vector.shape_cast %62 : vector<8x32xf32> to vector<1x8x32xf32>
    tpu.vector_store %arg10[%c0_23, %c0_24, %c0_25], %65 {strides = array<i32>} : memref<6x8x32xf32, #tpu.memory_space<vmem>>, vector<1x8x32xf32>,
    %cst_26 = arith.constant dense<0.000000e+00> : vector<8x384xf32>
    %66 = tpu.matmul %62, %32, %cst_26 {dimension_numbers = #tpu.dot_dimension_numbers<[1], [0], [0], [1], [0, 0, 1, 1], [], []>} : vector<8x32xf32>, vector<32x384xf32>, vector<8x384xf32> -> vector<8x384xf32>
    %67 = vector.extract_strided_slice %31 {offsets = [8, 0], sizes = [8, 384], strides = [1, 1]} : vector<48x384xf32> to vector<8x384xf32>
    %68 = vector.extract_strided_slice %67 {offsets = [0, 0], sizes = [8, 32], strides = [1, 1]} : vector<8x384xf32> to vector<8x32xf32>
    %69 = vector.extract_strided_slice %66 {offsets = [0, 0], sizes = [8, 32], strides = [1, 1]} : vector<8x384xf32> to vector<8x32xf32>
    %70 = arith.addf %68, %69 : vector<8x32xf32>
    %71 = arith.negf %70 : vector<8x32xf32>
    %72 = math.exp %71 : vector<8x32xf32>
    %cst_27 = arith.constant 1.000000e+00 : f32
    %73 = vector.broadcast %cst_27 : f32 to vector<8x32xf32>
    %74 = arith.addf %73, %72 : vector<8x32xf32>
    %75 = arith.divf %73, %74 : vector<8x32xf32>
    %76 = vector.extract_strided_slice %67 {offsets = [0, 128], sizes = [8, 32], strides = [1, 1]} : vector<8x384xf32> to vector<8x32xf32>
    %77 = vector.extract_strided_slice %66 {offsets = [0, 128], sizes = [8, 32], strides = [1, 1]} : vector<8x384xf32> to vector<8x32xf32>
    %78 = arith.addf %76, %77 : vector<8x32xf32>
    %79 = arith.negf %78 : vector<8x32xf32>
    %80 = math.exp %79 : vector<8x32xf32>
    %cst_28 = arith.constant 1.000000e+00 : f32
    %81 = vector.broadcast %cst_28 : f32 to vector<8x32xf32>
    %82 = arith.addf %81, %80 : vector<8x32xf32>
    %83 = arith.divf %81, %82 : vector<8x32xf32>
    %84 = vector.extract_strided_slice %67 {offsets = [0, 256], sizes = [8, 32], strides = [1, 1]} : vector<8x384xf32> to vector<8x32xf32>
    %85 = vector.extract_strided_slice %66 {offsets = [0, 256], sizes = [8, 32], strides = [1, 1]} : vector<8x384xf32> to vector<8x32xf32>
    %86 = vector.broadcast %33 : vector<1x32xf32> to vector<8x32xf32>
    %87 = arith.addf %85, %86 : vector<8x32xf32>
    %88 = arith.mulf %75, %87 : vector<8x32xf32>
    %89 = arith.addf %84, %88 : vector<8x32xf32>
    %90 = math.tanh %89 : vector<8x32xf32>
    %91 = arith.subf %62, %90 : vector<8x32xf32>
    %92 = arith.mulf %83, %91 : vector<8x32xf32>
    %93 = arith.addf %90, %92 : vector<8x32xf32>
    %c1 = arith.constant 1 : index
    %c0_29 = arith.constant 0 : index
    %c0_30 = arith.constant 0 : index
    %94 = vector.load %arg10[%c1, %c0_29, %c0_30] : memref<6x8x32xf32, #tpu.memory_space<vmem>>, vector<1x8x32xf32>
    %95 = vector.shape_cast %94 : vector<1x8x32xf32> to vector<8x32xf32>
    %96 = vector.shape_cast %93 : vector<8x32xf32> to vector<1x8x32xf32>
    tpu.vector_store %arg10[%c1, %c0_29, %c0_30], %96 {strides = array<i32>} : memref<6x8x32xf32, #tpu.memory_space<vmem>>, vector<1x8x32xf32>,
    %cst_31 = arith.constant dense<0.000000e+00> : vector<8x384xf32>
    %97 = tpu.matmul %93, %32, %cst_31 {dimension_numbers = #tpu.dot_dimension_numbers<[1], [0], [0], [1], [0, 0, 1, 1], [], []>} : vector<8x32xf32>, vector<32x384xf32>, vector<8x384xf32> -> vector<8x384xf32>
    %98 = vector.extract_strided_slice %31 {offsets = [16, 0], sizes = [8, 384], strides = [1, 1]} : vector<48x384xf32> to vector<8x384xf32>
    %99 = vector.extract_strided_slice %98 {offsets = [0, 0], sizes = [8, 32], strides = [1, 1]} : vector<8x384xf32> to vector<8x32xf32>
    %100 = vector.extract_strided_slice %97 {offsets = [0, 0], sizes = [8, 32], strides = [1, 1]} : vector<8x384xf32> to vector<8x32xf32>
    %101 = arith.addf %99, %100 : vector<8x32xf32>
    %102 = arith.negf %101 : vector<8x32xf32>
    %103 = math.exp %102 : vector<8x32xf32>
    %cst_32 = arith.constant 1.000000e+00 : f32
    %104 = vector.broadcast %cst_32 : f32 to vector<8x32xf32>
    %105 = arith.addf %104, %103 : vector<8x32xf32>
    %106 = arith.divf %104, %105 : vector<8x32xf32>
    %107 = vector.extract_strided_slice %98 {offsets = [0, 128], sizes = [8, 32], strides = [1, 1]} : vector<8x384xf32> to vector<8x32xf32>
    %108 = vector.extract_strided_slice %97 {offsets = [0, 128], sizes = [8, 32], strides = [1, 1]} : vector<8x384xf32> to vector<8x32xf32>
    %109 = arith.addf %107, %108 : vector<8x32xf32>
    %110 = arith.negf %109 : vector<8x32xf32>
    %111 = math.exp %110 : vector<8x32xf32>
    %cst_33 = arith.constant 1.000000e+00 : f32
    %112 = vector.broadcast %cst_33 : f32 to vector<8x32xf32>
    %113 = arith.addf %112, %111 : vector<8x32xf32>
    %114 = arith.divf %112, %113 : vector<8x32xf32>
    %115 = vector.extract_strided_slice %98 {offsets = [0, 256], sizes = [8, 32], strides = [1, 1]} : vector<8x384xf32> to vector<8x32xf32>
    %116 = vector.extract_strided_slice %97 {offsets = [0, 256], sizes = [8, 32], strides = [1, 1]} : vector<8x384xf32> to vector<8x32xf32>
    %117 = vector.broadcast %33 : vector<1x32xf32> to vector<8x32xf32>
    %118 = arith.addf %116, %117 : vector<8x32xf32>
    %119 = arith.mulf %106, %118 : vector<8x32xf32>
    %120 = arith.addf %115, %119 : vector<8x32xf32>
    %121 = math.tanh %120 : vector<8x32xf32>
    %122 = arith.subf %93, %121 : vector<8x32xf32>
    %123 = arith.mulf %114, %122 : vector<8x32xf32>
    %124 = arith.addf %121, %123 : vector<8x32xf32>
    %c2 = arith.constant 2 : index
    %c0_34 = arith.constant 0 : index
    %c0_35 = arith.constant 0 : index
    %125 = vector.load %arg10[%c2, %c0_34, %c0_35] : memref<6x8x32xf32, #tpu.memory_space<vmem>>, vector<1x8x32xf32>
    %126 = vector.shape_cast %125 : vector<1x8x32xf32> to vector<8x32xf32>
    %127 = vector.shape_cast %124 : vector<8x32xf32> to vector<1x8x32xf32>
    tpu.vector_store %arg10[%c2, %c0_34, %c0_35], %127 {strides = array<i32>} : memref<6x8x32xf32, #tpu.memory_space<vmem>>, vector<1x8x32xf32>,
    %cst_36 = arith.constant dense<0.000000e+00> : vector<8x384xf32>
    %128 = tpu.matmul %124, %32, %cst_36 {dimension_numbers = #tpu.dot_dimension_numbers<[1], [0], [0], [1], [0, 0, 1, 1], [], []>} : vector<8x32xf32>, vector<32x384xf32>, vector<8x384xf32> -> vector<8x384xf32>
    %129 = vector.extract_strided_slice %31 {offsets = [24, 0], sizes = [8, 384], strides = [1, 1]} : vector<48x384xf32> to vector<8x384xf32>
    %130 = vector.extract_strided_slice %129 {offsets = [0, 0], sizes = [8, 32], strides = [1, 1]} : vector<8x384xf32> to vector<8x32xf32>
    %131 = vector.extract_strided_slice %128 {offsets = [0, 0], sizes = [8, 32], strides = [1, 1]} : vector<8x384xf32> to vector<8x32xf32>
    %132 = arith.addf %130, %131 : vector<8x32xf32>
    %133 = arith.negf %132 : vector<8x32xf32>
    %134 = math.exp %133 : vector<8x32xf32>
    %cst_37 = arith.constant 1.000000e+00 : f32
    %135 = vector.broadcast %cst_37 : f32 to vector<8x32xf32>
    %136 = arith.addf %135, %134 : vector<8x32xf32>
    %137 = arith.divf %135, %136 : vector<8x32xf32>
    %138 = vector.extract_strided_slice %129 {offsets = [0, 128], sizes = [8, 32], strides = [1, 1]} : vector<8x384xf32> to vector<8x32xf32>
    %139 = vector.extract_strided_slice %128 {offsets = [0, 128], sizes = [8, 32], strides = [1, 1]} : vector<8x384xf32> to vector<8x32xf32>
    %140 = arith.addf %138, %139 : vector<8x32xf32>
    %141 = arith.negf %140 : vector<8x32xf32>
    %142 = math.exp %141 : vector<8x32xf32>
    %cst_38 = arith.constant 1.000000e+00 : f32
    %143 = vector.broadcast %cst_38 : f32 to vector<8x32xf32>
    %144 = arith.addf %143, %142 : vector<8x32xf32>
    %145 = arith.divf %143, %144 : vector<8x32xf32>
    %146 = vector.extract_strided_slice %129 {offsets = [0, 256], sizes = [8, 32], strides = [1, 1]} : vector<8x384xf32> to vector<8x32xf32>
    %147 = vector.extract_strided_slice %128 {offsets = [0, 256], sizes = [8, 32], strides = [1, 1]} : vector<8x384xf32> to vector<8x32xf32>
    %148 = vector.broadcast %33 : vector<1x32xf32> to vector<8x32xf32>
    %149 = arith.addf %147, %148 : vector<8x32xf32>
    %150 = arith.mulf %137, %149 : vector<8x32xf32>
    %151 = arith.addf %146, %150 : vector<8x32xf32>
    %152 = math.tanh %151 : vector<8x32xf32>
    %153 = arith.subf %124, %152 : vector<8x32xf32>
    %154 = arith.mulf %145, %153 : vector<8x32xf32>
    %155 = arith.addf %152, %154 : vector<8x32xf32>
    %c3 = arith.constant 3 : index
    %c0_39 = arith.constant 0 : index
    %c0_40 = arith.constant 0 : index
    %156 = vector.load %arg10[%c3, %c0_39, %c0_40] : memref<6x8x32xf32, #tpu.memory_space<vmem>>, vector<1x8x32xf32>
    %157 = vector.shape_cast %156 : vector<1x8x32xf32> to vector<8x32xf32>
    %158 = vector.shape_cast %155 : vector<8x32xf32> to vector<1x8x32xf32>
    tpu.vector_store %arg10[%c3, %c0_39, %c0_40], %158 {strides = array<i32>} : memref<6x8x32xf32, #tpu.memory_space<vmem>>, vector<1x8x32xf32>,
    %cst_41 = arith.constant dense<0.000000e+00> : vector<8x384xf32>
    %159 = tpu.matmul %155, %32, %cst_41 {dimension_numbers = #tpu.dot_dimension_numbers<[1], [0], [0], [1], [0, 0, 1, 1], [], []>} : vector<8x32xf32>, vector<32x384xf32>, vector<8x384xf32> -> vector<8x384xf32>
    %160 = vector.extract_strided_slice %31 {offsets = [32, 0], sizes = [8, 384], strides = [1, 1]} : vector<48x384xf32> to vector<8x384xf32>
    %161 = vector.extract_strided_slice %160 {offsets = [0, 0], sizes = [8, 32], strides = [1, 1]} : vector<8x384xf32> to vector<8x32xf32>
    %162 = vector.extract_strided_slice %159 {offsets = [0, 0], sizes = [8, 32], strides = [1, 1]} : vector<8x384xf32> to vector<8x32xf32>
    %163 = arith.addf %161, %162 : vector<8x32xf32>
    %164 = arith.negf %163 : vector<8x32xf32>
    %165 = math.exp %164 : vector<8x32xf32>
    %cst_42 = arith.constant 1.000000e+00 : f32
    %166 = vector.broadcast %cst_42 : f32 to vector<8x32xf32>
    %167 = arith.addf %166, %165 : vector<8x32xf32>
    %168 = arith.divf %166, %167 : vector<8x32xf32>
    %169 = vector.extract_strided_slice %160 {offsets = [0, 128], sizes = [8, 32], strides = [1, 1]} : vector<8x384xf32> to vector<8x32xf32>
    %170 = vector.extract_strided_slice %159 {offsets = [0, 128], sizes = [8, 32], strides = [1, 1]} : vector<8x384xf32> to vector<8x32xf32>
    %171 = arith.addf %169, %170 : vector<8x32xf32>
    %172 = arith.negf %171 : vector<8x32xf32>
    %173 = math.exp %172 : vector<8x32xf32>
    %cst_43 = arith.constant 1.000000e+00 : f32
    %174 = vector.broadcast %cst_43 : f32 to vector<8x32xf32>
    %175 = arith.addf %174, %173 : vector<8x32xf32>
    %176 = arith.divf %174, %175 : vector<8x32xf32>
    %177 = vector.extract_strided_slice %160 {offsets = [0, 256], sizes = [8, 32], strides = [1, 1]} : vector<8x384xf32> to vector<8x32xf32>
    %178 = vector.extract_strided_slice %159 {offsets = [0, 256], sizes = [8, 32], strides = [1, 1]} : vector<8x384xf32> to vector<8x32xf32>
    %179 = vector.broadcast %33 : vector<1x32xf32> to vector<8x32xf32>
    %180 = arith.addf %178, %179 : vector<8x32xf32>
    %181 = arith.mulf %168, %180 : vector<8x32xf32>
    %182 = arith.addf %177, %181 : vector<8x32xf32>
    %183 = math.tanh %182 : vector<8x32xf32>
    %184 = arith.subf %155, %183 : vector<8x32xf32>
    %185 = arith.mulf %176, %184 : vector<8x32xf32>
    %186 = arith.addf %183, %185 : vector<8x32xf32>
    %c4 = arith.constant 4 : index
    %c0_44 = arith.constant 0 : index
    %c0_45 = arith.constant 0 : index
    %187 = vector.load %arg10[%c4, %c0_44, %c0_45] : memref<6x8x32xf32, #tpu.memory_space<vmem>>, vector<1x8x32xf32>
    %188 = vector.shape_cast %187 : vector<1x8x32xf32> to vector<8x32xf32>
    %189 = vector.shape_cast %186 : vector<8x32xf32> to vector<1x8x32xf32>
    tpu.vector_store %arg10[%c4, %c0_44, %c0_45], %189 {strides = array<i32>} : memref<6x8x32xf32, #tpu.memory_space<vmem>>, vector<1x8x32xf32>,
    %cst_46 = arith.constant dense<0.000000e+00> : vector<8x384xf32>
    %190 = tpu.matmul %186, %32, %cst_46 {dimension_numbers = #tpu.dot_dimension_numbers<[1], [0], [0], [1], [0, 0, 1, 1], [], []>} : vector<8x32xf32>, vector<32x384xf32>, vector<8x384xf32> -> vector<8x384xf32>
    %191 = vector.extract_strided_slice %31 {offsets = [40, 0], sizes = [8, 384], strides = [1, 1]} : vector<48x384xf32> to vector<8x384xf32>
    %192 = vector.extract_strided_slice %191 {offsets = [0, 0], sizes = [8, 32], strides = [1, 1]} : vector<8x384xf32> to vector<8x32xf32>
    %193 = vector.extract_strided_slice %190 {offsets = [0, 0], sizes = [8, 32], strides = [1, 1]} : vector<8x384xf32> to vector<8x32xf32>
    %194 = arith.addf %192, %193 : vector<8x32xf32>
    %195 = arith.negf %194 : vector<8x32xf32>
    %196 = math.exp %195 : vector<8x32xf32>
    %cst_47 = arith.constant 1.000000e+00 : f32
    %197 = vector.broadcast %cst_47 : f32 to vector<8x32xf32>
    %198 = arith.addf %197, %196 : vector<8x32xf32>
    %199 = arith.divf %197, %198 : vector<8x32xf32>
    %200 = vector.extract_strided_slice %191 {offsets = [0, 128], sizes = [8, 32], strides = [1, 1]} : vector<8x384xf32> to vector<8x32xf32>
    %201 = vector.extract_strided_slice %190 {offsets = [0, 128], sizes = [8, 32], strides = [1, 1]} : vector<8x384xf32> to vector<8x32xf32>
    %202 = arith.addf %200, %201 : vector<8x32xf32>
    %203 = arith.negf %202 : vector<8x32xf32>
    %204 = math.exp %203 : vector<8x32xf32>
    %cst_48 = arith.constant 1.000000e+00 : f32
    %205 = vector.broadcast %cst_48 : f32 to vector<8x32xf32>
    %206 = arith.addf %205, %204 : vector<8x32xf32>
    %207 = arith.divf %205, %206 : vector<8x32xf32>
    %208 = vector.extract_strided_slice %191 {offsets = [0, 256], sizes = [8, 32], strides = [1, 1]} : vector<8x384xf32> to vector<8x32xf32>
    %209 = vector.extract_strided_slice %190 {offsets = [0, 256], sizes = [8, 32], strides = [1, 1]} : vector<8x384xf32> to vector<8x32xf32>
    %210 = vector.broadcast %33 : vector<1x32xf32> to vector<8x32xf32>
    %211 = arith.addf %209, %210 : vector<8x32xf32>
    %212 = arith.mulf %199, %211 : vector<8x32xf32>
    %213 = arith.addf %208, %212 : vector<8x32xf32>
    %214 = math.tanh %213 : vector<8x32xf32>
    %215 = arith.subf %186, %214 : vector<8x32xf32>
    %216 = arith.mulf %207, %215 : vector<8x32xf32>
    %217 = arith.addf %214, %216 : vector<8x32xf32>
    %c5 = arith.constant 5 : index
    %c0_49 = arith.constant 0 : index
    %c0_50 = arith.constant 0 : index
    %218 = vector.load %arg10[%c5, %c0_49, %c0_50] : memref<6x8x32xf32, #tpu.memory_space<vmem>>, vector<1x8x32xf32>
    %219 = vector.shape_cast %218 : vector<1x8x32xf32> to vector<8x32xf32>
    %220 = vector.shape_cast %217 : vector<8x32xf32> to vector<1x8x32xf32>
    tpu.vector_store %arg10[%c5, %c0_49, %c0_50], %220 {strides = array<i32>} : memref<6x8x32xf32, #tpu.memory_space<vmem>>, vector<1x8x32xf32>,
    %c0_51 = arith.constant 0 : index
    %c0_52 = arith.constant 0 : index
    %c0_53 = arith.constant 0 : index
    %221 = vector.load %arg10[%c0_51, %c0_52, %c0_53] : memref<6x8x32xf32, #tpu.memory_space<vmem>>, vector<6x8x32xf32>
    %cst_54 = arith.constant dense<0.000000e+00> : vector<6x8xf32>
    %222 = vector.multi_reduction <add>, %221, %cst_54 [2] : vector<6x8x32xf32> to vector<6x8xf32>
    %223 = vector.shape_cast %222 : vector<6x8xf32> to vector<6x8x1xf32>
    %cst_55 = arith.constant 3.200000e+01 : f32
    %224 = vector.broadcast %cst_55 : f32 to vector<6x8x1xf32>
    %225 = arith.divf %223, %224 : vector<6x8x1xf32>
    %226 = vector.broadcast %225 : vector<6x8x1xf32> to vector<6x8x32xf32>
    %227 = arith.subf %221, %226 : vector<6x8x32xf32>
    %228 = arith.mulf %227, %227 : vector<6x8x32xf32>
    %cst_56 = arith.constant dense<0.000000e+00> : vector<6x8xf32>
    %229 = vector.multi_reduction <add>, %228, %cst_56 [2] : vector<6x8x32xf32> to vector<6x8xf32>
    %230 = vector.shape_cast %229 : vector<6x8xf32> to vector<6x8x1xf32>
    %cst_57 = arith.constant 3.200000e+01 : f32
    %231 = vector.broadcast %cst_57 : f32 to vector<6x8x1xf32>
    %232 = arith.divf %230, %231 : vector<6x8x1xf32>
    %c0_58 = arith.constant 0 : index
    %c0_59 = arith.constant 0 : index
    %233 = vector.load %arg7[%c0_58, %c0_59] : memref<1x32xf32, #tpu.memory_space<vmem>>, vector<1x32xf32>
    %234 = vector.shape_cast %233 : vector<1x32xf32> to vector<1x1x32xf32>
    %c0_60 = arith.constant 0 : index
    %c0_61 = arith.constant 0 : index
    %235 = vector.load %arg8[%c0_60, %c0_61] : memref<1x32xf32, #tpu.memory_space<vmem>>, vector<1x32xf32>
    %236 = vector.shape_cast %235 : vector<1x32xf32> to vector<1x1x32xf32>
    %cst_62 = arith.constant 9.99999974E-6 : f32
    %237 = vector.broadcast %cst_62 : f32 to vector<6x8x1xf32>
    %238 = arith.addf %232, %237 : vector<6x8x1xf32>
    %239 = math.rsqrt %238 : vector<6x8x1xf32>
    %240 = vector.broadcast %239 : vector<6x8x1xf32> to vector<6x8x32xf32>
    %241 = arith.mulf %227, %240 : vector<6x8x32xf32>
    %242 = vector.broadcast %234 : vector<1x1x32xf32> to vector<6x8x32xf32>
    %243 = arith.mulf %241, %242 : vector<6x8x32xf32>
    %244 = vector.broadcast %236 : vector<1x1x32xf32> to vector<6x8x32xf32>
    %245 = arith.addf %243, %244 : vector<6x8x32xf32>
    %c0_63 = arith.constant 0 : index
    %c0_64 = arith.constant 0 : index
    %c0_65 = arith.constant 0 : index
    %246 = vector.load %arg9[%c0_63, %c0_64, %c0_65] : memref<6x8x32xf32, #tpu.memory_space<vmem>>, vector<6x8x32xf32>
    tpu.vector_store %arg9[%c0_63, %c0_64, %c0_65], %245 {strides = array<i32>} : memref<6x8x32xf32, #tpu.memory_space<vmem>>, vector<6x8x32xf32>,
    return
  }
}

</mosaic_0001>

<llo_original>
// kernel: tpu_custom_call.1
$region0: #{tpu_custom_call.1}
  #allocation0 [shape = 'u32[]', space=smem, size = 0x4, offset = 0x4, fixed_abs, tag = 'smem constant byte address 0x4 - core index']
  #allocation1 [shape = 'u32[72,128]{1,0:T(1,128)}', space=vmem, size = 0x9000, scoped, tag = 'internal scratch']
  #allocation2 [shape = 'f32[6,8,32]{2,1,0:T(8,128)}', space=vmem, size = 0x6000, scoped, tag = 'scratch operand']
  %s0 = inlined_call_operand.hbm [shape: f32[6,8,16], index: 0, kind: input, shape index: {}]
  %s1 = inlined_call_operand.hbm [shape: f32[1,8], index: 1, kind: input, shape index: {}]
  %s2 = inlined_call_operand.vmem [shape: f32[1,8], index: 2, kind: input, shape index: {}]
  %s3 = inlined_call_operand.hbm [shape: f32[16,384], index: 3, kind: input, shape index: {}]
  %s4 = inlined_call_operand.hbm [shape: f32[32,384], index: 4, kind: input, shape index: {}]
  %s5 = inlined_call_operand.vmem [shape: f32[1,384], index: 5, kind: input, shape index: {}]
  %s6 = inlined_call_operand.vmem [shape: f32[1,32], index: 6, kind: input, shape index: {}]
  %s7 = inlined_call_operand.vmem [shape: f32[1,32], index: 7, kind: input, shape index: {}]
  %s8 = inlined_call_operand.vmem [shape: f32[1,32], index: 8, kind: input, shape index: {}]
  %s9 = inlined_call_operand.hbm [shape: f32[6,8,32], index: 9, kind: output, shape index: {}]
  %s10 = sld [smem:[#allocation0]]
  $region62: #{tpu_custom_call.1} parent=0
    _
  %s12 = ssub.s32 1, %s10
  %s13 = scalar_select 0, %s12, %s10
  $region1: #{tpu_custom_call.1} parent=0
    #allocation3 [shape = 'u8[24576]{0}', space=vmem, size = 0x6000, scoped, tag = 'input window, operand 0, single buffered']
    #allocation4 [shape = 's32[1]{0}', space=sflag, size = 0x4, scoped, tag = 'scoped memory for tpu_custom_call.1']
    #allocation5 [shape = 's32[1]{0}', space=sflag, size = 0x4, scoped, tag = 'scoped memory for tpu_custom_call.1']
    #allocation6 [shape = 'u8[512]{0}', space=vmem, size = 0x400, scoped, tag = 'input window, operand 1, single buffered']
    #allocation7 [shape = 's32[1]{0}', space=sflag, size = 0x4, scoped, tag = 'scoped memory for tpu_custom_call.1']
    #allocation8 [shape = 'u8[24576]{0}', space=vmem, size = 0x6000, scoped, tag = 'input window, operand 3, single buffered']
    #allocation9 [shape = 'u8[49152]{0}', space=vmem, size = 0xc000, scoped, tag = 'input window, operand 4, single buffered']
    #allocation10 [shape = 's32[1]{0}', space=sflag, size = 0x4, scoped, tag = 'scoped memory for tpu_custom_call.1']
    #allocation11 [shape = 'u8[24576]{0}', space=vmem, size = 0x6000, scoped, tag = 'output window, operand 0, single buffered']
    %14 = vsyncpa [#allocation4], 0
    %15 = vsyncpa [#allocation7], 0
    %16 = vsyncpa [#allocation10], 0
    %17 = vsyncpa [#allocation5], 0
    // Predicated region
    $region2: #{tpu_custom_call.1} parent=1 // pred_check
      _
    $region3: #{tpu_custom_call.1} parent=1 // pred_check_branch
      %19 = sbr.rel (0) target = $region5
    $region4: #{tpu_custom_call.1} parent=1 // pred_region
      %21 = vsyncadd [#allocation4], 0
      %s22 = sshll.u32 %s0, 4
      %s23 = int_to_ptr.hbm [resolvable:$true] %s22
      %s24 = sshll.u32 [#allocation3], 4
      %s25 = int_to_ptr.vmem [resolvable:$true] %s24
      %30 = dma.hbm_to_vmem [thread:$0]  %s23, 768, %s25, [#allocation4], 128, 128, 8
    $region5: #{tpu_custom_call.1} parent=1 // pred_fallthru
      _
    // Predicated region
    $region6: #{tpu_custom_call.1} parent=1 // pred_check
      _
    $region7: #{tpu_custom_call.1} parent=1 // pred_check_branch
      %32 = sbr.rel (0) target = $region9
    $region8: #{tpu_custom_call.1} parent=1 // pred_region
      %34 = vsyncadd [#allocation7], 0
      %s36 = sshll.u32 %s1, 4
      %s37 = int_to_ptr.hbm [resolvable:$true] %s36
      %s38 = sshll.u32 [#allocation6], 4
      %s39 = int_to_ptr.vmem [resolvable:$true] %s38
      %41 = dma.hbm_to_vmem [thread:$0]  %s37, 16, %s39, [#allocation7]
    $region9: #{tpu_custom_call.1} parent=1 // pred_fallthru
      _
    // Predicated region
    $region10: #{tpu_custom_call.1} parent=1 // pred_check
      _
    $region11: #{tpu_custom_call.1} parent=1 // pred_check_branch
      %43 = sbr.rel (0) target = $region13
    $region12: #{tpu_custom_call.1} parent=1 // pred_region
      _
    $region13: #{tpu_custom_call.1} parent=1 // pred_fallthru
      _
    // Predicated region
    $region14: #{tpu_custom_call.1} parent=1 // pred_check
      _
    $region15: #{tpu_custom_call.1} parent=1 // pred_check_branch
      %45 = sbr.rel (0) target = $region17
    $region16: #{tpu_custom_call.1} parent=1 // pred_region
      %47 = vsyncadd [#allocation7], 0
      %s48 = sshll.u32 %s3, 4
      %s49 = int_to_ptr.hbm [resolvable:$true] %s48
      %s50 = sshll.u32 [#allocation8], 4
      %s51 = int_to_ptr.vmem [resolvable:$true] %s50
      %56 = dma.hbm_to_vmem [thread:$0]  %s49, 768, %s51, [#allocation7], 384, 384, 24
    $region17: #{tpu_custom_call.1} parent=1 // pred_fallthru
      _
    // Predicated region
    $region18: #{tpu_custom_call.1} parent=1 // pred_check
      _
    $region19: #{tpu_custom_call.1} parent=1 // pred_check_branch
      %58 = sbr.rel (0) target = $region21
    $region20: #{tpu_custom_call.1} parent=1 // pred_region
      %60 = vsyncadd [#allocation10], 0
      %s61 = sshll.u32 %s4, 4
      %s62 = int_to_ptr.hbm [resolvable:$true] %s61
      %s63 = sshll.u32 [#allocation9], 4
      %s64 = int_to_ptr.vmem [resolvable:$true] %s63
      %69 = dma.hbm_to_vmem [thread:$0]  %s62, 1536, %s64, [#allocation10], 384, 384, 24
    $region21: #{tpu_custom_call.1} parent=1 // pred_fallthru
      _
    // Predicated region
    $region22: #{tpu_custom_call.1} parent=1 // pred_check
      _
    $region23: #{tpu_custom_call.1} parent=1 // pred_check_branch
      %71 = sbr.rel (0) target = $region25
    $region24: #{tpu_custom_call.1} parent=1 // pred_region
      _
    $region25: #{tpu_custom_call.1} parent=1 // pred_fallthru
      _
    // Predicated region
    $region26: #{tpu_custom_call.1} parent=1 // pred_check
      _
    $region27: #{tpu_custom_call.1} parent=1 // pred_check_branch
      %73 = sbr.rel (0) target = $region29
    $region28: #{tpu_custom_call.1} parent=1 // pred_region
      _
    $region29: #{tpu_custom_call.1} parent=1 // pred_fallthru
      _
    // Predicated region
    $region30: #{tpu_custom_call.1} parent=1 // pred_check
      _
    $region31: #{tpu_custom_call.1} parent=1 // pred_check_branch
      %75 = sbr.rel (0) target = $region33
    $region32: #{tpu_custom_call.1} parent=1 // pred_region
      _
    $region33: #{tpu_custom_call.1} parent=1 // pred_fallthru
      _
    // Predicated region
    $region34: #{tpu_custom_call.1} parent=1 // pred_check
      _
    $region35: #{tpu_custom_call.1} parent=1 // pred_check_branch
      %77 = sbr.rel (0) target = $region37
    $region36: #{tpu_custom_call.1} parent=1 // pred_region
      _
    $region37: #{tpu_custom_call.1} parent=1 // pred_fallthru
      _
    // Predicated region
    $region38: #{tpu_custom_call.1} parent=1 // pred_check
      _
    $region39: #{tpu_custom_call.1} parent=1 // pred_check_branch
      %79 = sbr.rel (0) target = $region41
    $region40: #{tpu_custom_call.1} parent=1 // pred_region
      %81 = dma.done [#allocation4], 768
    $region41: #{tpu_custom_call.1} parent=1 // pred_fallthru
      _
    // Predicated region
    $region42: #{tpu_custom_call.1} parent=1 // pred_check
      _
    $region43: #{tpu_custom_call.1} parent=1 // pred_check_branch
      %83 = sbr.rel (0) target = $region45
    $region44: #{tpu_custom_call.1} parent=1 // pred_region
      %85 = dma.done [#allocation7], 16
    $region45: #{tpu_custom_call.1} parent=1 // pred_fallthru
      _
    // Predicated region
    $region46: #{tpu_custom_call.1} parent=1 // pred_check
      _
    $region47: #{tpu_custom_call.1} parent=1 // pred_check_branch
      %87 = sbr.rel (0) target = $region49
    $region48: #{tpu_custom_call.1} parent=1 // pred_region
      %89 = dma.done [#allocation7], 768
    $region49: #{tpu_custom_call.1} parent=1 // pred_fallthru
      _
    // Predicated region
    $region50: #{tpu_custom_call.1} parent=1 // pred_check
      _
    $region51: #{tpu_custom_call.1} parent=1 // pred_check_branch
      %91 = sbr.rel (0) target = $region53
    $region52: #{tpu_custom_call.1} parent=1 // pred_region
      %93 = dma.done [#allocation10], 1536
    $region53: #{tpu_custom_call.1} parent=1 // pred_fallthru
      _
    %v94 = vld [vmem:[#allocation3] sm:$0xff]
    %v95 = vld [vmem:[#allocation3 + $0x8] sm:$0xff]
    %v96 = vld [vmem:[#allocation3 + $0x10] sm:$0xff]
    %v97 = vld [vmem:[#allocation3 + $0x18] sm:$0xff]
    %v98 = vld [vmem:[#allocation3 + $0x20] sm:$0xff]
    %v99 = vld [vmem:[#allocation3 + $0x28] sm:$0xff]
    %vm100 = vcmask 130048
    %v101 = vsel %vm100, %v94, 0.0
    %v102 = vsel %vm100, %v95, 0.0
    %v103 = vadd.f32 %v101, %v102
    %v104 = vsel %vm100, %v96, 0.0
    %v105 = vadd.f32 %v103, %v104
    %v106 = vsel %vm100, %v97, 0.0
    %v107 = vadd.f32 %v105, %v106
    %v108 = vsel %vm100, %v98, 0.0
    %v109 = vadd.f32 %v107, %v108
    %v110 = vsel %vm100, %v99, 0.0
    %v111 = vadd.f32 %v109, %v110
    %112 = vadd.xlane.f32.xlu0 %v111
    %v113 = vpop.xlane.xlu0 %112
    %v114 = vrcp.pop 96.0
    %v115 = vmul.f32 96.0, %v114
    %v116 = vsub.f32 1.0, %v115
    %v117 = vmul.f32 %v114, %v116
    %v118 = vadd.f32 %v114, %v117
    %vm119 = vweird.f32 %v114
    %v120 = vsel %vm119, %v114, %v118
    %v121 = vmul.f32 %v113, %v120
    %v122 = vmul.f32 %v94, %v94
    %v123 = vmul.f32 %v95, %v95
    %v124 = vmul.f32 %v96, %v96
    %v125 = vmul.f32 %v97, %v97
    %v126 = vmul.f32 %v98, %v98
    %v127 = vmul.f32 %v99, %v99
    %v128 = vsel %vm100, %v122, 0.0
    %v129 = vsel %vm100, %v123, 0.0
    %v130 = vadd.f32 %v128, %v129
    %v131 = vsel %vm100, %v124, 0.0
    %v132 = vadd.f32 %v130, %v131
    %v133 = vsel %vm100, %v125, 0.0
    %v134 = vadd.f32 %v132, %v133
    %v135 = vsel %vm100, %v126, 0.0
    %v136 = vadd.f32 %v134, %v135
    %v137 = vsel %vm100, %v127, 0.0
    %v138 = vadd.f32 %v136, %v137
    %139 = vadd.xlane.f32.xlu0 %v138
    %v140 = vpop.xlane.xlu0 %139
    %v141 = vmul.f32 %v140, %v120
    %v142 = vmul.f32 %v121, %v121
    %v143 = vsub.f32 %v141, %v142
    %v144 = vld [vmem:[#allocation6] sm:$0x1]
    %v145 = vperm.slane %v144, 0
    %v146 = vlaneseq
    %v147 = vshrl.u32 %v146, 7
    %149 = vset.pattern.permute.xlu0 %v147
    %150 = vperm.xlu0 %149, %v145
    %v151 = vpop.permute.xlu0 %150
    %v152 = vadd.f32 %v143, 1e-05
    %v153 = vrsqrt.pop %v152
    %v154 = vmul.f32 %v153, %v152
    %v155 = vmul.f32 %v154, %v153
    %v156 = vmul.f32 0.5, %v155
    %v157 = vsub.f32 1.5, %v156
    %v158 = vmul.f32 %v153, %v157
    %vm159 = vweird.f32 %v152
    %vm160 = vweird.f32 %v153
    %vm161 = vmor %vm159, %vm160
    %v162 = vsel %vm161, %v153, %v158
    %v163 = vmul.f32 %v151, %v162
    %v164 = vld [vmem:[%s2] sm:$0x1]
    %v165 = vperm.slane %v164, 0
    %v166 = vlaneseq
    %v167 = vshrl.u32 %v166, 7
    %169 = vset.pattern.permute.xlu0 %v167
    %170 = vperm.xlu0 %169, %v165
    %v171 = vpop.permute.xlu0 %170
    %v172 = vmul.f32 %v121, %v163
    %v173 = vsub.f32 %v171, %v172
    %v174 = vmul.f32 %v94, %v163
    %v175 = vmul.f32 %v95, %v163
    %v176 = vmul.f32 %v96, %v163
    %v177 = vmul.f32 %v97, %v163
    %v178 = vmul.f32 %v98, %v163
    %v179 = vmul.f32 %v99, %v163
    %v180 = vadd.f32 %v174, %v173
    %v181 = vadd.f32 %v175, %v173
    %v182 = vadd.f32 %v176, %v173
    %v183 = vadd.f32 %v177, %v173
    %v184 = vadd.f32 %v178, %v173
    %v185 = vadd.f32 %v179, %v173
    %v186 = vld [vmem:[#allocation8] sm:$0xff]
    %v187 = vld [vmem:[#allocation8 + $0x8] sm:$0xff]
    %v188 = vld [vmem:[#allocation8 + $0x10] sm:$0xff]
    %v189 = vld [vmem:[#allocation8 + $0x18] sm:$0xff]
    %v190 = vld [vmem:[#allocation8 + $0x20] sm:$0xff]
    %v191 = vld [vmem:[#allocation8 + $0x28] sm:$0xff]
    %v192 = vld [vmem:[%s5] sm:$0x7]
    %v194 = vperm.slane %v192, 0
    %v195 = vperm.slane %v192, 1
    %v196 = vperm.slane %v192, 2
    %v201 = vsel %vm100, %v180, 0
    %v204 = vsel %vm100, %v181, 0
    %v207 = vsel %vm100, %v182, 0
    %v210 = vsel %vm100, %v183, 0
    %v213 = vsel %vm100, %v184, 0
    %v216 = vsel %vm100, %v185, 0
    %218 = vmatpush.msra.mxu0 0.0
    %219 = vmatpush.msra.mxu0 0.0
    %220 = vmatpush.msra.mxu0 0.0
    %221 = vmatpush.msra.mxu0 0.0
    %222 = vmatpush.msra.mxu0 0.0
    %223 = vmatpush.msra.mxu0 0.0
    %224 = vmatpush.msra.mxu0 0.0
    %225 = vmatpush.msra.mxu0 0.0
    %226 = vmatpush.msra.mxu0 0.0
    %227 = vmatpush.msra.mxu0 0.0
    %228 = vmatpush.msra.mxu0 0.0
    %229 = vmatpush.msra.mxu0 0.0
    %230 = vmatpush.msra.mxu0 0.0
    %231 = vmatpush.msra.mxu0 0.0
    %232 = vmatpush.msra.mxu0 %v189
    %233 = vmatpush.msra.mxu0 %v186
    %234 = vmatmul.f32.gmra.mxu0 %v201
    %v235 = vpop.f32.mrf.mxu0
    %v236 = vadd.f32 %v194, %v235
    %237 = vmatmul.f32.gmra.mxu0 %v204
    %v238 = vpop.f32.mrf.mxu0
    %v239 = vadd.f32 %v194, %v238
    %240 = vmatmul.f32.gmra.mxu0 %v207
    %v241 = vpop.f32.mrf.mxu0
    %v242 = vadd.f32 %v194, %v241
    %243 = vmatmul.f32.gmra.mxu0 %v210
    %v244 = vpop.f32.mrf.mxu0
    %v245 = vadd.f32 %v194, %v244
    %246 = vmatmul.f32.gmra.mxu0 %v213
    %v247 = vpop.f32.mrf.mxu0
    %v248 = vadd.f32 %v194, %v247
    %249 = vmatmul.f32.gmra.mxu0 %v216
    %v250 = vpop.f32.mrf.mxu0
    %v251 = vadd.f32 %v194, %v250
    %252 = vdwg.mxu0
    %253 = vmatpush.msra.mxu0 0.0
    %254 = vmatpush.msra.mxu0 0.0
    %255 = vmatpush.msra.mxu0 0.0
    %256 = vmatpush.msra.mxu0 0.0
    %257 = vmatpush.msra.mxu0 0.0
    %258 = vmatpush.msra.mxu0 0.0
    %259 = vmatpush.msra.mxu0 0.0
    %260 = vmatpush.msra.mxu0 0.0
    %261 = vmatpush.msra.mxu0 0.0
    %262 = vmatpush.msra.mxu0 0.0
    %263 = vmatpush.msra.mxu0 0.0
    %264 = vmatpush.msra.mxu0 0.0
    %265 = vmatpush.msra.mxu0 0.0
    %266 = vmatpush.msra.mxu0 0.0
    %267 = vmatpush.msra.mxu0 %v190
    %268 = vmatpush.msra.mxu0 %v187
    %269 = vmatmul.f32.gmra.mxu0 %v201
    %v270 = vpop.f32.mrf.mxu0
    %v271 = vadd.f32 %v195, %v270
    %272 = vmatmul.f32.gmra.mxu0 %v204
    %v273 = vpop.f32.mrf.mxu0
    %v274 = vadd.f32 %v195, %v273
    %275 = vmatmul.f32.gmra.mxu0 %v207
    %v276 = vpop.f32.mrf.mxu0
    %v277 = vadd.f32 %v195, %v276
    %278 = vmatmul.f32.gmra.mxu0 %v210
    %v279 = vpop.f32.mrf.mxu0
    %v280 = vadd.f32 %v195, %v279
    %281 = vmatmul.f32.gmra.mxu0 %v213
    %v282 = vpop.f32.mrf.mxu0
    %v283 = vadd.f32 %v195, %v282
    %284 = vmatmul.f32.gmra.mxu0 %v216
    %v285 = vpop.f32.mrf.mxu0
    %v286 = vadd.f32 %v195, %v285
    %287 = vdwg.mxu0
    %288 = vmatpush.msra.mxu0 0.0
    %289 = vmatpush.msra.mxu0 0.0
    %290 = vmatpush.msra.mxu0 0.0
    %291 = vmatpush.msra.mxu0 0.0
    %292 = vmatpush.msra.mxu0 0.0
    %293 = vmatpush.msra.mxu0 0.0
    %294 = vmatpush.msra.mxu0 0.0
    %295 = vmatpush.msra.mxu0 0.0
    %296 = vmatpush.msra.mxu0 0.0
    %297 = vmatpush.msra.mxu0 0.0
    %298 = vmatpush.msra.mxu0 0.0
    %299 = vmatpush.msra.mxu0 0.0
    %300 = vmatpush.msra.mxu0 0.0
    %301 = vmatpush.msra.mxu0 0.0
    %302 = vmatpush.msra.mxu0 %v191
    %303 = vmatpush.msra.mxu0 %v188
    %304 = vmatmul.f32.gmra.mxu0 %v201
    %v305 = vpop.f32.mrf.mxu0
    %v306 = vadd.f32 %v196, %v305
    %307 = vmatmul.f32.gmra.mxu0 %v204
    %v308 = vpop.f32.mrf.mxu0
    %v309 = vadd.f32 %v196, %v308
    %310 = vmatmul.f32.gmra.mxu0 %v207
    %v311 = vpop.f32.mrf.mxu0
    %v312 = vadd.f32 %v196, %v311
    %313 = vmatmul.f32.gmra.mxu0 %v210
    %v314 = vpop.f32.mrf.mxu0
    %v315 = vadd.f32 %v196, %v314
    %316 = vmatmul.f32.gmra.mxu0 %v213
    %v317 = vpop.f32.mrf.mxu0
    %v318 = vadd.f32 %v196, %v317
    %319 = vmatmul.f32.gmra.mxu0 %v216
    %v320 = vpop.f32.mrf.mxu0
    %v321 = vadd.f32 %v196, %v320
    %322 = vdwg.mxu0
    %v323 = vld [vmem:[#allocation9] sm:$0xff]
    %v324 = vld [vmem:[#allocation9 + $0x8] sm:$0xff]
    %v325 = vld [vmem:[#allocation9 + $0x10] sm:$0xff]
    %v326 = vld [vmem:[#allocation9 + $0x18] sm:$0xff]
    %v327 = vld [vmem:[#allocation9 + $0x20] sm:$0xff]
    %v328 = vld [vmem:[#allocation9 + $0x28] sm:$0xff]
    %v329 = vld [vmem:[#allocation9 + $0x30] sm:$0xff]
    %v330 = vld [vmem:[#allocation9 + $0x38] sm:$0xff]
    %v331 = vld [vmem:[#allocation9 + $0x40] sm:$0xff]
    %v332 = vld [vmem:[#allocation9 + $0x48] sm:$0xff]
    %v333 = vld [vmem:[#allocation9 + $0x50] sm:$0xff]
    %v334 = vld [vmem:[#allocation9 + $0x58] sm:$0xff]
    %v335 = vld [vmem:[%s6] sm:$0x1]
    %vm336 = vcmask 261120
    %v338 = vsel %vm336, 0.0, 0
    %340 = vmatpush.msra.mxu0 0.0
    %341 = vmatpush.msra.mxu0 0.0
    %342 = vmatpush.msra.mxu0 0.0
    %343 = vmatpush.msra.mxu0 0.0
    %344 = vmatpush.msra.mxu0 0.0
    %345 = vmatpush.msra.mxu0 0.0
    %346 = vmatpush.msra.mxu0 0.0
    %347 = vmatpush.msra.mxu0 0.0
    %348 = vmatpush.msra.mxu0 0.0
    %349 = vmatpush.msra.mxu0 0.0
    %350 = vmatpush.msra.mxu0 0.0
    %351 = vmatpush.msra.mxu0 0.0
    %352 = vmatpush.msra.mxu0 %v332
    %353 = vmatpush.msra.mxu0 %v329
    %354 = vmatpush.msra.mxu0 %v326
    %355 = vmatpush.msra.mxu0 %v323
    %356 = vmatmul.f32.gmra.mxu0 %v338
    %v357 = vpop.f32.mrf.mxu0
    %v358 = vadd.f32 0.0, %v357
    %359 = vdwg.mxu0
    %360 = vmatpush.msra.mxu0 0.0
    %361 = vmatpush.msra.mxu0 0.0
    %362 = vmatpush.msra.mxu0 0.0
    %363 = vmatpush.msra.mxu0 0.0
    %364 = vmatpush.msra.mxu0 0.0
    %365 = vmatpush.msra.mxu0 0.0
    %366 = vmatpush.msra.mxu0 0.0
    %367 = vmatpush.msra.mxu0 0.0
    %368 = vmatpush.msra.mxu0 0.0
    %369 = vmatpush.msra.mxu0 0.0
    %370 = vmatpush.msra.mxu0 0.0
    %371 = vmatpush.msra.mxu0 0.0
    %372 = vmatpush.msra.mxu0 %v333
    %373 = vmatpush.msra.mxu0 %v330
    %374 = vmatpush.msra.mxu0 %v327
    %375 = vmatpush.msra.mxu0 %v324
    %376 = vmatmul.f32.gmra.mxu0 %v338
    %v377 = vpop.f32.mrf.mxu0
    %v378 = vadd.f32 0.0, %v377
    %379 = vdwg.mxu0
    %380 = vmatpush.msra.mxu0 0.0
    %381 = vmatpush.msra.mxu0 0.0
    %382 = vmatpush.msra.mxu0 0.0
    %383 = vmatpush.msra.mxu0 0.0
    %384 = vmatpush.msra.mxu0 0.0
    %385 = vmatpush.msra.mxu0 0.0
    %386 = vmatpush.msra.mxu0 0.0
    %387 = vmatpush.msra.mxu0 0.0
    %388 = vmatpush.msra.mxu0 0.0
    %389 = vmatpush.msra.mxu0 0.0
    %390 = vmatpush.msra.mxu0 0.0
    %391 = vmatpush.msra.mxu0 0.0
    %392 = vmatpush.msra.mxu0 %v334
    %393 = vmatpush.msra.mxu0 %v331
    %394 = vmatpush.msra.mxu0 %v328
    %395 = vmatpush.msra.mxu0 %v325
    %396 = vmatmul.f32.gmra.mxu0 %v338
    %v397 = vpop.f32.mrf.mxu0
    %v398 = vadd.f32 0.0, %v397
    %399 = vdwg.mxu0
    %v400 = vadd.f32 %v236, %v358
    %v401 = vxor.u32 %v400, 2147483648
    %v402 = vmul.f32 %v401, 1.442695
    %v403 = vpow.pop %v402
    %v404 = vadd.f32 %v403, 1.0
    %v405 = vrcp.pop %v404
    %v406 = vmul.f32 %v404, %v405
    %v407 = vsub.f32 1.0, %v406
    %v408 = vmul.f32 %v405, %v407
    %v409 = vadd.f32 %v405, %v408
    %vm410 = vweird.f32 %v404
    %vm411 = vweird.f32 %v405
    %vm412 = vmor %vm410, %vm411
    %v413 = vsel %vm412, %v405, %v409
    %v414 = vand.u32 2147483647, %v404
    %vm415 = vcmp.eq.f32.partialorder %v414, 8.507059e+37
    %v416 = vand.u32 %v404, 2147483648
    %v417 = vor.u32 1.1754944e-38, %v416
    %v418 = vsel %vm415, %v417, %v413
    %v419 = vmul.f32 1.0, %v418
    %v420 = vadd.f32 %v271, %v378
    %v421 = vxor.u32 %v420, 2147483648
    %v422 = vmul.f32 %v421, 1.442695
    %v423 = vpow.pop %v422
    %v424 = vadd.f32 %v423, 1.0
    %v425 = vrcp.pop %v424
    %v426 = vmul.f32 %v424, %v425
    %v427 = vsub.f32 1.0, %v426
    %v428 = vmul.f32 %v425, %v427
    %v429 = vadd.f32 %v425, %v428
    %vm430 = vweird.f32 %v424
    %vm431 = vweird.f32 %v425
    %vm432 = vmor %vm430, %vm431
    %v433 = vsel %vm432, %v425, %v429
    %v434 = vand.u32 2147483647, %v424
    %vm435 = vcmp.eq.f32.partialorder %v434, 8.507059e+37
    %v436 = vand.u32 %v424, 2147483648
    %v437 = vor.u32 1.1754944e-38, %v436
    %v438 = vsel %vm435, %v437, %v433
    %v439 = vmul.f32 1.0, %v438
    %v441 = vperm.slane %v335, 0
    %v443 = vadd.f32 %v398, %v441
    %v444 = vmul.f32 %v419, %v443
    %v445 = vadd.f32 %v306, %v444
    %v446 = vtanh.pop %v445
    %v447 = vsub.f32 0.0, %v446
    %v448 = vmul.f32 %v439, %v447
    %v449 = vadd.f32 %v446, %v448
    %450 = vst.msk [vmem:[#allocation2] sm:$0xff] %vm336, %v449
    %v452 = vsel %vm336, %v449, 0
    %454 = vmatpush.msra.mxu0 0.0
    %455 = vmatpush.msra.mxu0 0.0
    %456 = vmatpush.msra.mxu0 0.0
    %457 = vmatpush.msra.mxu0 0.0
    %458 = vmatpush.msra.mxu0 0.0
    %459 = vmatpush.msra.mxu0 0.0
    %460 = vmatpush.msra.mxu0 0.0
    %461 = vmatpush.msra.mxu0 0.0
    %462 = vmatpush.msra.mxu0 0.0
    %463 = vmatpush.msra.mxu0 0.0
    %464 = vmatpush.msra.mxu0 0.0
    %465 = vmatpush.msra.mxu0 0.0
    %466 = vmatpush.msra.mxu0 %v332
    %467 = vmatpush.msra.mxu0 %v329
    %468 = vmatpush.msra.mxu0 %v326
    %469 = vmatpush.msra.mxu0 %v323
    %470 = vmatmul.f32.gmra.mxu0 %v452
    %v471 = vpop.f32.mrf.mxu0
    %v472 = vadd.f32 0.0, %v471
    %473 = vdwg.mxu0
    %474 = vmatpush.msra.mxu0 0.0
    %475 = vmatpush.msra.mxu0 0.0
    %476 = vmatpush.msra.mxu0 0.0
    %477 = vmatpush.msra.mxu0 0.0
    %478 = vmatpush.msra.mxu0 0.0
    %479 = vmatpush.msra.mxu0 0.0
    %480 = vmatpush.msra.mxu0 0.0
    %481 = vmatpush.msra.mxu0 0.0
    %482 = vmatpush.msra.mxu0 0.0
    %483 = vmatpush.msra.mxu0 0.0
    %484 = vmatpush.msra.mxu0 0.0
    %485 = vmatpush.msra.mxu0 0.0
    %486 = vmatpush.msra.mxu0 %v333
    %487 = vmatpush.msra.mxu0 %v330
    %488 = vmatpush.msra.mxu0 %v327
    %489 = vmatpush.msra.mxu0 %v324
    %490 = vmatmul.f32.gmra.mxu0 %v452
    %v491 = vpop.f32.mrf.mxu0
    %v492 = vadd.f32 0.0, %v491
    %493 = vdwg.mxu0
    %494 = vmatpush.msra.mxu0 0.0
    %495 = vmatpush.msra.mxu0 0.0
    %496 = vmatpush.msra.mxu0 0.0
    %497 = vmatpush.msra.mxu0 0.0
    %498 = vmatpush.msra.mxu0 0.0
    %499 = vmatpush.msra.mxu0 0.0
    %500 = vmatpush.msra.mxu0 0.0
    %501 = vmatpush.msra.mxu0 0.0
    %502 = vmatpush.msra.mxu0 0.0
    %503 = vmatpush.msra.mxu0 0.0
    %504 = vmatpush.msra.mxu0 0.0
    %505 = vmatpush.msra.mxu0 0.0
    %506 = vmatpush.msra.mxu0 %v334
    %507 = vmatpush.msra.mxu0 %v331
    %508 = vmatpush.msra.mxu0 %v328
    %509 = vmatpush.msra.mxu0 %v325
    %510 = vmatmul.f32.gmra.mxu0 %v452
    %v511 = vpop.f32.mrf.mxu0
    %v512 = vadd.f32 0.0, %v511
    %513 = vdwg.mxu0
    %v514 = vadd.f32 %v239, %v472
    %v515 = vxor.u32 %v514, 2147483648
    %v516 = vmul.f32 %v515, 1.442695
    %v517 = vpow.pop %v516
    %v518 = vadd.f32 %v517, 1.0
    %v519 = vrcp.pop %v518
    %v520 = vmul.f32 %v518, %v519
    %v521 = vsub.f32 1.0, %v520
    %v522 = vmul.f32 %v519, %v521
    %v523 = vadd.f32 %v519, %v522
    %vm524 = vweird.f32 %v518
    %vm525 = vweird.f32 %v519
    %vm526 = vmor %vm524, %vm525
    %v527 = vsel %vm526, %v519, %v523
    %v528 = vand.u32 2147483647, %v518
    %vm529 = vcmp.eq.f32.partialorder %v528, 8.507059e+37
    %v530 = vand.u32 %v518, 2147483648
    %v531 = vor.u32 1.1754944e-38, %v530
    %v532 = vsel %vm529, %v531, %v527
    %v533 = vmul.f32 1.0, %v532
    %v534 = vadd.f32 %v274, %v492
    %v535 = vxor.u32 %v534, 2147483648
    %v536 = vmul.f32 %v535, 1.442695
    %v537 = vpow.pop %v536
    %v538 = vadd.f32 %v537, 1.0
    %v539 = vrcp.pop %v538
    %v540 = vmul.f32 %v538, %v539
    %v541 = vsub.f32 1.0, %v540
    %v542 = vmul.f32 %v539, %v541
    %v543 = vadd.f32 %v539, %v542
    %vm544 = vweird.f32 %v538
    %vm545 = vweird.f32 %v539
    %vm546 = vmor %vm544, %vm545
    %v547 = vsel %vm546, %v539, %v543
    %v548 = vand.u32 2147483647, %v538
    %vm549 = vcmp.eq.f32.partialorder %v548, 8.507059e+37
    %v550 = vand.u32 %v538, 2147483648
    %v551 = vor.u32 1.1754944e-38, %v550
    %v552 = vsel %vm549, %v551, %v547
    %v553 = vmul.f32 1.0, %v552
    %v554 = vadd.f32 %v512, %v441
    %v555 = vmul.f32 %v533, %v554
    %v556 = vadd.f32 %v309, %v555
    %v557 = vtanh.pop %v556
    %v558 = vsub.f32 %v449, %v557
    %v559 = vmul.f32 %v553, %v558
    %v560 = vadd.f32 %v557, %v559
    %s561 = scalar_lea.vmem [#allocation2], 8
    %562 = vst.msk [vmem:[%s561] sm:$0xff] %vm336, %v560
    %v564 = vsel %vm336, %v560, 0
    %566 = vmatpush.msra.mxu0 0.0
    %567 = vmatpush.msra.mxu0 0.0
    %568 = vmatpush.msra.mxu0 0.0
    %569 = vmatpush.msra.mxu0 0.0
    %570 = vmatpush.msra.mxu0 0.0
    %571 = vmatpush.msra.mxu0 0.0
    %572 = vmatpush.msra.mxu0 0.0
    %573 = vmatpush.msra.mxu0 0.0
    %574 = vmatpush.msra.mxu0 0.0
    %575 = vmatpush.msra.mxu0 0.0
    %576 = vmatpush.msra.mxu0 0.0
    %577 = vmatpush.msra.mxu0 0.0
    %578 = vmatpush.msra.mxu0 %v332
    %579 = vmatpush.msra.mxu0 %v329
    %580 = vmatpush.msra.mxu0 %v326
    %581 = vmatpush.msra.mxu0 %v323
    %582 = vmatmul.f32.gmra.mxu0 %v564
    %v583 = vpop.f32.mrf.mxu0
    %v584 = vadd.f32 0.0, %v583
    %585 = vdwg.mxu0
    %586 = vmatpush.msra.mxu0 0.0
    %587 = vmatpush.msra.mxu0 0.0
    %588 = vmatpush.msra.mxu0 0.0
    %589 = vmatpush.msra.mxu0 0.0
    %590 = vmatpush.msra.mxu0 0.0
    %591 = vmatpush.msra.mxu0 0.0
    %592 = vmatpush.msra.mxu0 0.0
    %593 = vmatpush.msra.mxu0 0.0
    %594 = vmatpush.msra.mxu0 0.0
    %595 = vmatpush.msra.mxu0 0.0
    %596 = vmatpush.msra.mxu0 0.0
    %597 = vmatpush.msra.mxu0 0.0
    %598 = vmatpush.msra.mxu0 %v333
    %599 = vmatpush.msra.mxu0 %v330
    %600 = vmatpush.msra.mxu0 %v327
    %601 = vmatpush.msra.mxu0 %v324
    %602 = vmatmul.f32.gmra.mxu0 %v564
    %v603 = vpop.f32.mrf.mxu0
    %v604 = vadd.f32 0.0, %v603
    %605 = vdwg.mxu0
    %606 = vmatpush.msra.mxu0 0.0
    %607 = vmatpush.msra.mxu0 0.0
    %608 = vmatpush.msra.mxu0 0.0
    %609 = vmatpush.msra.mxu0 0.0
    %610 = vmatpush.msra.mxu0 0.0
    %611 = vmatpush.msra.mxu0 0.0
    %612 = vmatpush.msra.mxu0 0.0
    %613 = vmatpush.msra.mxu0 0.0
    %614 = vmatpush.msra.mxu0 0.0
    %615 = vmatpush.msra.mxu0 0.0
    %616 = vmatpush.msra.mxu0 0.0
    %617 = vmatpush.msra.mxu0 0.0
    %618 = vmatpush.msra.mxu0 %v334
    %619 = vmatpush.msra.mxu0 %v331
    %620 = vmatpush.msra.mxu0 %v328
    %621 = vmatpush.msra.mxu0 %v325
    %622 = vmatmul.f32.gmra.mxu0 %v564
    %v623 = vpop.f32.mrf.mxu0
    %v624 = vadd.f32 0.0, %v623
    %625 = vdwg.mxu0
    %v626 = vadd.f32 %v242, %v584
    %v627 = vxor.u32 %v626, 2147483648
    %v628 = vmul.f32 %v627, 1.442695
    %v629 = vpow.pop %v628
    %v630 = vadd.f32 %v629, 1.0
    %v631 = vrcp.pop %v630
    %v632 = vmul.f32 %v630, %v631
    %v633 = vsub.f32 1.0, %v632
    %v634 = vmul.f32 %v631, %v633
    %v635 = vadd.f32 %v631, %v634
    %vm636 = vweird.f32 %v630
    %vm637 = vweird.f32 %v631
    %vm638 = vmor %vm636, %vm637
    %v639 = vsel %vm638, %v631, %v635
    %v640 = vand.u32 2147483647, %v630
    %vm641 = vcmp.eq.f32.partialorder %v640, 8.507059e+37
    %v642 = vand.u32 %v630, 2147483648
    %v643 = vor.u32 1.1754944e-38, %v642
    %v644 = vsel %vm641, %v643, %v639
    %v645 = vmul.f32 1.0, %v644
    %v646 = vadd.f32 %v277, %v604
    %v647 = vxor.u32 %v646, 2147483648
    %v648 = vmul.f32 %v647, 1.442695
    %v649 = vpow.pop %v648
    %v650 = vadd.f32 %v649, 1.0
    %v651 = vrcp.pop %v650
    %v652 = vmul.f32 %v650, %v651
    %v653 = vsub.f32 1.0, %v652
    %v654 = vmul.f32 %v651, %v653
    %v655 = vadd.f32 %v651, %v654
    %vm656 = vweird.f32 %v650
    %vm657 = vweird.f32 %v651
    %vm658 = vmor %vm656, %vm657
    %v659 = vsel %vm658, %v651, %v655
    %v660 = vand.u32 2147483647, %v650
    %vm661 = vcmp.eq.f32.partialorder %v660, 8.507059e+37
    %v662 = vand.u32 %v650, 2147483648
    %v663 = vor.u32 1.1754944e-38, %v662
    %v664 = vsel %vm661, %v663, %v659
    %v665 = vmul.f32 1.0, %v664
    %v666 = vadd.f32 %v624, %v441
    %v667 = vmul.f32 %v645, %v666
    %v668 = vadd.f32 %v312, %v667
    %v669 = vtanh.pop %v668
    %v670 = vsub.f32 %v560, %v669
    %v671 = vmul.f32 %v665, %v670
    %v672 = vadd.f32 %v669, %v671
    %s673 = scalar_lea.vmem [#allocation2], 16
    %674 = vst.msk [vmem:[%s673] sm:$0xff] %vm336, %v672
    %v676 = vsel %vm336, %v672, 0
    %678 = vmatpush.msra.mxu0 0.0
    %679 = vmatpush.msra.mxu0 0.0
    %680 = vmatpush.msra.mxu0 0.0
    %681 = vmatpush.msra.mxu0 0.0
    %682 = vmatpush.msra.mxu0 0.0
    %683 = vmatpush.msra.mxu0 0.0
    %684 = vmatpush.msra.mxu0 0.0
    %685 = vmatpush.msra.mxu0 0.0
    %686 = vmatpush.msra.mxu0 0.0
    %687 = vmatpush.msra.mxu0 0.0
    %688 = vmatpush.msra.mxu0 0.0
    %689 = vmatpush.msra.mxu0 0.0
    %690 = vmatpush.msra.mxu0 %v332
    %691 = vmatpush.msra.mxu0 %v329
    %692 = vmatpush.msra.mxu0 %v326
    %693 = vmatpush.msra.mxu0 %v323
    %694 = vmatmul.f32.gmra.mxu0 %v676
    %v695 = vpop.f32.mrf.mxu0
    %v696 = vadd.f32 0.0, %v695
    %697 = vdwg.mxu0
    %698 = vmatpush.msra.mxu0 0.0
    %699 = vmatpush.msra.mxu0 0.0
    %700 = vmatpush.msra.mxu0 0.0
    %701 = vmatpush.msra.mxu0 0.0
    %702 = vmatpush.msra.mxu0 0.0
    %703 = vmatpush.msra.mxu0 0.0
    %704 = vmatpush.msra.mxu0 0.0
    %705 = vmatpush.msra.mxu0 0.0
    %706 = vmatpush.msra.mxu0 0.0
    %707 = vmatpush.msra.mxu0 0.0
    %708 = vmatpush.msra.mxu0 0.0
    %709 = vmatpush.msra.mxu0 0.0
    %710 = vmatpush.msra.mxu0 %v333
    %711 = vmatpush.msra.mxu0 %v330
    %712 = vmatpush.msra.mxu0 %v327
    %713 = vmatpush.msra.mxu0 %v324
    %714 = vmatmul.f32.gmra.mxu0 %v676
    %v715 = vpop.f32.mrf.mxu0
    %v716 = vadd.f32 0.0, %v715
    %717 = vdwg.mxu0
    %718 = vmatpush.msra.mxu0 0.0
    %719 = vmatpush.msra.mxu0 0.0
    %720 = vmatpush.msra.mxu0 0.0
    %721 = vmatpush.msra.mxu0 0.0
    %722 = vmatpush.msra.mxu0 0.0
    %723 = vmatpush.msra.mxu0 0.0
    %724 = vmatpush.msra.mxu0 0.0
    %725 = vmatpush.msra.mxu0 0.0
    %726 = vmatpush.msra.mxu0 0.0
    %727 = vmatpush.msra.mxu0 0.0
    %728 = vmatpush.msra.mxu0 0.0
    %729 = vmatpush.msra.mxu0 0.0
    %730 = vmatpush.msra.mxu0 %v334
    %731 = vmatpush.msra.mxu0 %v331
    %732 = vmatpush.msra.mxu0 %v328
    %733 = vmatpush.msra.mxu0 %v325
    %734 = vmatmul.f32.gmra.mxu0 %v676
    %v735 = vpop.f32.mrf.mxu0
    %v736 = vadd.f32 0.0, %v735
    %737 = vdwg.mxu0
    %v738 = vadd.f32 %v245, %v696
    %v739 = vxor.u32 %v738, 2147483648
    %v740 = vmul.f32 %v739, 1.442695
    %v741 = vpow.pop %v740
    %v742 = vadd.f32 %v741, 1.0
    %v743 = vrcp.pop %v742
    %v744 = vmul.f32 %v742, %v743
    %v745 = vsub.f32 1.0, %v744
    %v746 = vmul.f32 %v743, %v745
    %v747 = vadd.f32 %v743, %v746
    %vm748 = vweird.f32 %v742
    %vm749 = vweird.f32 %v743
    %vm750 = vmor %vm748, %vm749
    %v751 = vsel %vm750, %v743, %v747
    %v752 = vand.u32 2147483647, %v742
    %vm753 = vcmp.eq.f32.partialorder %v752, 8.507059e+37
    %v754 = vand.u32 %v742, 2147483648
    %v755 = vor.u32 1.1754944e-38, %v754
    %v756 = vsel %vm753, %v755, %v751
    %v757 = vmul.f32 1.0, %v756
    %v758 = vadd.f32 %v280, %v716
    %v759 = vxor.u32 %v758, 2147483648
    %v760 = vmul.f32 %v759, 1.442695
    %v761 = vpow.pop %v760
    %v762 = vadd.f32 %v761, 1.0
    %v763 = vrcp.pop %v762
    %v764 = vmul.f32 %v762, %v763
    %v765 = vsub.f32 1.0, %v764
    %v766 = vmul.f32 %v763, %v765
    %v767 = vadd.f32 %v763, %v766
    %vm768 = vweird.f32 %v762
    %vm769 = vweird.f32 %v763
    %vm770 = vmor %vm768, %vm769
    %v771 = vsel %vm770, %v763, %v767
    %v772 = vand.u32 2147483647, %v762
    %vm773 = vcmp.eq.f32.partialorder %v772, 8.507059e+37
    %v774 = vand.u32 %v762, 2147483648
    %v775 = vor.u32 1.1754944e-38, %v774
    %v776 = vsel %vm773, %v775, %v771
    %v777 = vmul.f32 1.0, %v776
    %v778 = vadd.f32 %v736, %v441
    %v779 = vmul.f32 %v757, %v778
    %v780 = vadd.f32 %v315, %v779
    %v781 = vtanh.pop %v780
    %v782 = vsub.f32 %v672, %v781
    %v783 = vmul.f32 %v777, %v782
    %v784 = vadd.f32 %v781, %v783
    %s785 = scalar_lea.vmem [#allocation2], 24
    %786 = vst.msk [vmem:[%s785] sm:$0xff] %vm336, %v784
    %v788 = vsel %vm336, %v784, 0
    %790 = vmatpush.msra.mxu0 0.0
    %791 = vmatpush.msra.mxu0 0.0
    %792 = vmatpush.msra.mxu0 0.0
    %793 = vmatpush.msra.mxu0 0.0
    %794 = vmatpush.msra.mxu0 0.0
    %795 = vmatpush.msra.mxu0 0.0
    %796 = vmatpush.msra.mxu0 0.0
    %797 = vmatpush.msra.mxu0 0.0
    %798 = vmatpush.msra.mxu0 0.0
    %799 = vmatpush.msra.mxu0 0.0
    %800 = vmatpush.msra.mxu0 0.0
    %801 = vmatpush.msra.mxu0 0.0
    %802 = vmatpush.msra.mxu0 %v332
    %803 = vmatpush.msra.mxu0 %v329
    %804 = vmatpush.msra.mxu0 %v326
    %805 = vmatpush.msra.mxu0 %v323
    %806 = vmatmul.f32.gmra.mxu0 %v788
    %v807 = vpop.f32.mrf.mxu0
    %v808 = vadd.f32 0.0, %v807
    %809 = vdwg.mxu0
    %810 = vmatpush.msra.mxu0 0.0
    %811 = vmatpush.msra.mxu0 0.0
    %812 = vmatpush.msra.mxu0 0.0
    %813 = vmatpush.msra.mxu0 0.0
    %814 = vmatpush.msra.mxu0 0.0
    %815 = vmatpush.msra.mxu0 0.0
    %816 = vmatpush.msra.mxu0 0.0
    %817 = vmatpush.msra.mxu0 0.0
    %818 = vmatpush.msra.mxu0 0.0
    %819 = vmatpush.msra.mxu0 0.0
    %820 = vmatpush.msra.mxu0 0.0
    %821 = vmatpush.msra.mxu0 0.0
    %822 = vmatpush.msra.mxu0 %v333
    %823 = vmatpush.msra.mxu0 %v330
    %824 = vmatpush.msra.mxu0 %v327
    %825 = vmatpush.msra.mxu0 %v324
    %826 = vmatmul.f32.gmra.mxu0 %v788
    %v827 = vpop.f32.mrf.mxu0
    %v828 = vadd.f32 0.0, %v827
    %829 = vdwg.mxu0
    %830 = vmatpush.msra.mxu0 0.0
    %831 = vmatpush.msra.mxu0 0.0
    %832 = vmatpush.msra.mxu0 0.0
    %833 = vmatpush.msra.mxu0 0.0
    %834 = vmatpush.msra.mxu0 0.0
    %835 = vmatpush.msra.mxu0 0.0
    %836 = vmatpush.msra.mxu0 0.0
    %837 = vmatpush.msra.mxu0 0.0
    %838 = vmatpush.msra.mxu0 0.0
    %839 = vmatpush.msra.mxu0 0.0
    %840 = vmatpush.msra.mxu0 0.0
    %841 = vmatpush.msra.mxu0 0.0
    %842 = vmatpush.msra.mxu0 %v334
    %843 = vmatpush.msra.mxu0 %v331
    %844 = vmatpush.msra.mxu0 %v328
    %845 = vmatpush.msra.mxu0 %v325
    %846 = vmatmul.f32.gmra.mxu0 %v788
    %v847 = vpop.f32.mrf.mxu0
    %v848 = vadd.f32 0.0, %v847
    %849 = vdwg.mxu0
    %v850 = vadd.f32 %v248, %v808
    %v851 = vxor.u32 %v850, 2147483648
    %v852 = vmul.f32 %v851, 1.442695
    %v853 = vpow.pop %v852
    %v854 = vadd.f32 %v853, 1.0
    %v855 = vrcp.pop %v854
    %v856 = vmul.f32 %v854, %v855
    %v857 = vsub.f32 1.0, %v856
    %v858 = vmul.f32 %v855, %v857
    %v859 = vadd.f32 %v855, %v858
    %vm860 = vweird.f32 %v854
    %vm861 = vweird.f32 %v855
    %vm862 = vmor %vm860, %vm861
    %v863 = vsel %vm862, %v855, %v859
    %v864 = vand.u32 2147483647, %v854
    %vm865 = vcmp.eq.f32.partialorder %v864, 8.507059e+37
    %v866 = vand.u32 %v854, 2147483648
    %v867 = vor.u32 1.1754944e-38, %v866
    %v868 = vsel %vm865, %v867, %v863
    %v869 = vmul.f32 1.0, %v868
    %v870 = vadd.f32 %v283, %v828
    %v871 = vxor.u32 %v870, 2147483648
    %v872 = vmul.f32 %v871, 1.442695
    %v873 = vpow.pop %v872
    %v874 = vadd.f32 %v873, 1.0
    %v875 = vrcp.pop %v874
    %v876 = vmul.f32 %v874, %v875
    %v877 = vsub.f32 1.0, %v876
    %v878 = vmul.f32 %v875, %v877
    %v879 = vadd.f32 %v875, %v878
    %vm880 = vweird.f32 %v874
    %vm881 = vweird.f32 %v875
    %vm882 = vmor %vm880, %vm881
    %v883 = vsel %vm882, %v875, %v879
    %v884 = vand.u32 2147483647, %v874
    %vm885 = vcmp.eq.f32.partialorder %v884, 8.507059e+37
    %v886 = vand.u32 %v874, 2147483648
    %v887 = vor.u32 1.1754944e-38, %v886
    %v888 = vsel %vm885, %v887, %v883
    %v889 = vmul.f32 1.0, %v888
    %v890 = vadd.f32 %v848, %v441
    %v891 = vmul.f32 %v869, %v890
    %v892 = vadd.f32 %v318, %v891
    %v893 = vtanh.pop %v892
    %v894 = vsub.f32 %v784, %v893
    %v895 = vmul.f32 %v889, %v894
    %v896 = vadd.f32 %v893, %v895
    %s897 = scalar_lea.vmem [#allocation2], 32
    %898 = vst.msk [vmem:[%s897] sm:$0xff] %vm336, %v896
    %v900 = vsel %vm336, %v896, 0
    %902 = vmatpush.msra.mxu0 0.0
    %903 = vmatpush.msra.mxu0 0.0
    %904 = vmatpush.msra.mxu0 0.0
    %905 = vmatpush.msra.mxu0 0.0
    %906 = vmatpush.msra.mxu0 0.0
    %907 = vmatpush.msra.mxu0 0.0
    %908 = vmatpush.msra.mxu0 0.0
    %909 = vmatpush.msra.mxu0 0.0
    %910 = vmatpush.msra.mxu0 0.0
    %911 = vmatpush.msra.mxu0 0.0
    %912 = vmatpush.msra.mxu0 0.0
    %913 = vmatpush.msra.mxu0 0.0
    %914 = vmatpush.msra.mxu0 %v332
    %915 = vmatpush.msra.mxu0 %v329
    %916 = vmatpush.msra.mxu0 %v326
    %917 = vmatpush.msra.mxu0 %v323
    %918 = vmatmul.f32.gmra.mxu0 %v900
    %v919 = vpop.f32.mrf.mxu0
    %v920 = vadd.f32 0.0, %v919
    %921 = vdwg.mxu0
    %922 = vmatpush.msra.mxu0 0.0
    %923 = vmatpush.msra.mxu0 0.0
    %924 = vmatpush.msra.mxu0 0.0
    %925 = vmatpush.msra.mxu0 0.0
    %926 = vmatpush.msra.mxu0 0.0
    %927 = vmatpush.msra.mxu0 0.0
    %928 = vmatpush.msra.mxu0 0.0
    %929 = vmatpush.msra.mxu0 0.0
    %930 = vmatpush.msra.mxu0 0.0
    %931 = vmatpush.msra.mxu0 0.0
    %932 = vmatpush.msra.mxu0 0.0
    %933 = vmatpush.msra.mxu0 0.0
    %934 = vmatpush.msra.mxu0 %v333
    %935 = vmatpush.msra.mxu0 %v330
    %936 = vmatpush.msra.mxu0 %v327
    %937 = vmatpush.msra.mxu0 %v324
    %938 = vmatmul.f32.gmra.mxu0 %v900
    %v939 = vpop.f32.mrf.mxu0
    %v940 = vadd.f32 0.0, %v939
    %941 = vdwg.mxu0
    %942 = vmatpush.msra.mxu0 0.0
    %943 = vmatpush.msra.mxu0 0.0
    %944 = vmatpush.msra.mxu0 0.0
    %945 = vmatpush.msra.mxu0 0.0
    %946 = vmatpush.msra.mxu0 0.0
    %947 = vmatpush.msra.mxu0 0.0
    %948 = vmatpush.msra.mxu0 0.0
    %949 = vmatpush.msra.mxu0 0.0
    %950 = vmatpush.msra.mxu0 0.0
    %951 = vmatpush.msra.mxu0 0.0
    %952 = vmatpush.msra.mxu0 0.0
    %953 = vmatpush.msra.mxu0 0.0
    %954 = vmatpush.msra.mxu0 %v334
    %955 = vmatpush.msra.mxu0 %v331
    %956 = vmatpush.msra.mxu0 %v328
    %957 = vmatpush.msra.mxu0 %v325
    %958 = vmatmul.f32.gmra.mxu0 %v900
    %v959 = vpop.f32.mrf.mxu0
    %v960 = vadd.f32 0.0, %v959
    %961 = vdwg.mxu0
    %v962 = vadd.f32 %v251, %v920
    %v963 = vxor.u32 %v962, 2147483648
    %v964 = vmul.f32 %v963, 1.442695
    %v965 = vpow.pop %v964
    %v966 = vadd.f32 %v965, 1.0
    %v967 = vrcp.pop %v966
    %v968 = vmul.f32 %v966, %v967
    %v969 = vsub.f32 1.0, %v968
    %v970 = vmul.f32 %v967, %v969
    %v971 = vadd.f32 %v967, %v970
    %vm972 = vweird.f32 %v966
    %vm973 = vweird.f32 %v967
    %vm974 = vmor %vm972, %vm973
    %v975 = vsel %vm974, %v967, %v971
    %v976 = vand.u32 2147483647, %v966
    %vm977 = vcmp.eq.f32.partialorder %v976, 8.507059e+37
    %v978 = vand.u32 %v966, 2147483648
    %v979 = vor.u32 1.1754944e-38, %v978
    %v980 = vsel %vm977, %v979, %v975
    %v981 = vmul.f32 1.0, %v980
    %v982 = vadd.f32 %v286, %v940
    %v983 = vxor.u32 %v982, 2147483648
    %v984 = vmul.f32 %v983, 1.442695
    %v985 = vpow.pop %v984
    %v986 = vadd.f32 %v985, 1.0
    %v987 = vrcp.pop %v986
    %v988 = vmul.f32 %v986, %v987
    %v989 = vsub.f32 1.0, %v988
    %v990 = vmul.f32 %v987, %v989
    %v991 = vadd.f32 %v987, %v990
    %vm992 = vweird.f32 %v986
    %vm993 = vweird.f32 %v987
    %vm994 = vmor %vm992, %vm993
    %v995 = vsel %vm994, %v987, %v991
    %v996 = vand.u32 2147483647, %v986
    %vm997 = vcmp.eq.f32.partialorder %v996, 8.507059e+37
    %v998 = vand.u32 %v986, 2147483648
    %v999 = vor.u32 1.1754944e-38, %v998
    %v1000 = vsel %vm997, %v999, %v995
    %v1001 = vmul.f32 1.0, %v1000
    %v1002 = vadd.f32 %v960, %v441
    %v1003 = vmul.f32 %v981, %v1002
    %v1004 = vadd.f32 %v321, %v1003
    %v1005 = vtanh.pop %v1004
    %v1006 = vsub.f32 %v896, %v1005
    %v1007 = vmul.f32 %v1001, %v1006
    %v1008 = vadd.f32 %v1005, %v1007
    %s1009 = scalar_lea.vmem [#allocation2], 40
    %1010 = vst.msk [vmem:[%s1009] sm:$0xff] %vm336, %v1008
    %v1011 = vld [vmem:[#allocation2] sm:$0xff]
    %v1012 = vld [vmem:[#allocation2 + $0x8] sm:$0xff]
    %v1013 = vld [vmem:[#allocation2 + $0x10] sm:$0xff]
    %v1014 = vld [vmem:[#allocation2 + $0x18] sm:$0xff]
    %v1015 = vld [vmem:[#allocation2 + $0x20] sm:$0xff]
    %v1016 = vld [vmem:[#allocation2 + $0x28] sm:$0xff]
    %v1017 = vsel %vm336, %v1011, 0.0
    %1018 = vadd.xlane.f32.xlu0 %v1017
    %v1019 = vpop.xlane.xlu0 %1018
    %v1020 = vsel %vm336, %v1012, 0.0
    %1021 = vadd.xlane.f32.xlu0 %v1020
    %v1022 = vpop.xlane.xlu0 %1021
    %v1023 = vsel %vm336, %v1013, 0.0
    %1024 = vadd.xlane.f32.xlu0 %v1023
    %v1025 = vpop.xlane.xlu0 %1024
    %v1026 = vsel %vm336, %v1014, 0.0
    %1027 = vadd.xlane.f32.xlu0 %v1026
    %v1028 = vpop.xlane.xlu0 %1027
    %v1029 = vsel %vm336, %v1015, 0.0
    %1030 = vadd.xlane.f32.xlu0 %v1029
    %v1031 = vpop.xlane.xlu0 %1030
    %v1032 = vsel %vm336, %v1016, 0.0
    %1033 = vadd.xlane.f32.xlu0 %v1032
    %v1034 = vpop.xlane.xlu0 %1033
    %v1035 = vrcp.pop 32.0
    %v1036 = vmul.f32 32.0, %v1035
    %v1037 = vsub.f32 1.0, %v1036
    %v1038 = vmul.f32 %v1035, %v1037
    %v1039 = vadd.f32 %v1035, %v1038
    %vm1040 = vweird.f32 %v1035
    %v1041 = vsel %vm1040, %v1035, %v1039
    %v1042 = vmul.f32 %v1019, %v1041
    %v1043 = vmul.f32 %v1022, %v1041
    %v1044 = vmul.f32 %v1025, %v1041
    %v1045 = vmul.f32 %v1028, %v1041
    %v1046 = vmul.f32 %v1031, %v1041
    %v1047 = vmul.f32 %v1034, %v1041
    %v1048 = vsub.f32 %v1011, %v1042
    %v1049 = vsub.f32 %v1012, %v1043
    %v1050 = vsub.f32 %v1013, %v1044
    %v1051 = vsub.f32 %v1014, %v1045
    %v1052 = vsub.f32 %v1015, %v1046
    %v1053 = vsub.f32 %v1016, %v1047
    %v1054 = vmul.f32 %v1048, %v1048
    %v1055 = vmul.f32 %v1049, %v1049
    %v1056 = vmul.f32 %v1050, %v1050
    %v1057 = vmul.f32 %v1051, %v1051
    %v1058 = vmul.f32 %v1052, %v1052
    %v1059 = vmul.f32 %v1053, %v1053
    %v1060 = vsel %vm336, %v1054, 0.0
    %1061 = vadd.xlane.f32.xlu0 %v1060
    %v1062 = vpop.xlane.xlu0 %1061
    %v1063 = vsel %vm336, %v1055, 0.0
    %1064 = vadd.xlane.f32.xlu0 %v1063
    %v1065 = vpop.xlane.xlu0 %1064
    %v1066 = vsel %vm336, %v1056, 0.0
    %1067 = vadd.xlane.f32.xlu0 %v1066
    %v1068 = vpop.xlane.xlu0 %1067
    %v1069 = vsel %vm336, %v1057, 0.0
    %1070 = vadd.xlane.f32.xlu0 %v1069
    %v1071 = vpop.xlane.xlu0 %1070
    %v1072 = vsel %vm336, %v1058, 0.0
    %1073 = vadd.xlane.f32.xlu0 %v1072
    %v1074 = vpop.xlane.xlu0 %1073
    %v1075 = vsel %vm336, %v1059, 0.0
    %1076 = vadd.xlane.f32.xlu0 %v1075
    %v1077 = vpop.xlane.xlu0 %1076
    %v1078 = vmul.f32 %v1062, %v1041
    %v1079 = vmul.f32 %v1065, %v1041
    %v1080 = vmul.f32 %v1068, %v1041
    %v1081 = vmul.f32 %v1071, %v1041
    %v1082 = vmul.f32 %v1074, %v1041
    %v1083 = vmul.f32 %v1077, %v1041
    %v1084 = vld [vmem:[%s7] sm:$0x1]
    %v1085 = vld [vmem:[%s8] sm:$0x1]
    %v1086 = vadd.f32 %v1078, 1e-05
    %v1087 = vadd.f32 %v1079, 1e-05
    %v1088 = vadd.f32 %v1080, 1e-05
    %v1089 = vadd.f32 %v1081, 1e-05
    %v1090 = vadd.f32 %v1082, 1e-05
    %v1091 = vadd.f32 %v1083, 1e-05
    %v1092 = vrsqrt.pop %v1086
    %v1093 = vmul.f32 %v1092, %v1086
    %v1094 = vmul.f32 %v1093, %v1092
    %v1095 = vmul.f32 0.5, %v1094
    %v1096 = vsub.f32 1.5, %v1095
    %v1097 = vmul.f32 %v1092, %v1096
    %vm1098 = vweird.f32 %v1086
    %vm1099 = vweird.f32 %v1092
    %vm1100 = vmor %vm1098, %vm1099
    %v1101 = vsel %vm1100, %v1092, %v1097
    %v1102 = vrsqrt.pop %v1087
    %v1103 = vmul.f32 %v1102, %v1087
    %v1104 = vmul.f32 %v1103, %v1102
    %v1105 = vmul.f32 0.5, %v1104
    %v1106 = vsub.f32 1.5, %v1105
    %v1107 = vmul.f32 %v1102, %v1106
    %vm1108 = vweird.f32 %v1087
    %vm1109 = vweird.f32 %v1102
    %vm1110 = vmor %vm1108, %vm1109
    %v1111 = vsel %vm1110, %v1102, %v1107
    %v1112 = vrsqrt.pop %v1088
    %v1113 = vmul.f32 %v1112, %v1088
    %v1114 = vmul.f32 %v1113, %v1112
    %v1115 = vmul.f32 0.5, %v1114
    %v1116 = vsub.f32 1.5, %v1115
    %v1117 = vmul.f32 %v1112, %v1116
    %vm1118 = vweird.f32 %v1088
    %vm1119 = vweird.f32 %v1112
    %vm1120 = vmor %vm1118, %vm1119
    %v1121 = vsel %vm1120, %v1112, %v1117
    %v1122 = vrsqrt.pop %v1089
    %v1123 = vmul.f32 %v1122, %v1089
    %v1124 = vmul.f32 %v1123, %v1122
    %v1125 = vmul.f32 0.5, %v1124
    %v1126 = vsub.f32 1.5, %v1125
    %v1127 = vmul.f32 %v1122, %v1126
    %vm1128 = vweird.f32 %v1089
    %vm1129 = vweird.f32 %v1122
    %vm1130 = vmor %vm1128, %vm1129
    %v1131 = vsel %vm1130, %v1122, %v1127
    %v1132 = vrsqrt.pop %v1090
    %v1133 = vmul.f32 %v1132, %v1090
    %v1134 = vmul.f32 %v1133, %v1132
    %v1135 = vmul.f32 0.5, %v1134
    %v1136 = vsub.f32 1.5, %v1135
    %v1137 = vmul.f32 %v1132, %v1136
    %vm1138 = vweird.f32 %v1090
    %vm1139 = vweird.f32 %v1132
    %vm1140 = vmor %vm1138, %vm1139
    %v1141 = vsel %vm1140, %v1132, %v1137
    %v1142 = vrsqrt.pop %v1091
    %v1143 = vmul.f32 %v1142, %v1091
    %v1144 = vmul.f32 %v1143, %v1142
    %v1145 = vmul.f32 0.5, %v1144
    %v1146 = vsub.f32 1.5, %v1145
    %v1147 = vmul.f32 %v1142, %v1146
    %vm1148 = vweird.f32 %v1091
    %vm1149 = vweird.f32 %v1142
    %vm1150 = vmor %vm1148, %vm1149
    %v1151 = vsel %vm1150, %v1142, %v1147
    %v1152 = vmul.f32 %v1048, %v1101
    %v1153 = vmul.f32 %v1049, %v1111
    %v1154 = vmul.f32 %v1050, %v1121
    %v1155 = vmul.f32 %v1051, %v1131
    %v1156 = vmul.f32 %v1052, %v1141
    %v1157 = vmul.f32 %v1053, %v1151
    %v1159 = vperm.slane %v1084, 0
    %v1161 = vmul.f32 %v1152, %v1159
    %v1162 = vmul.f32 %v1153, %v1159
    %v1163 = vmul.f32 %v1154, %v1159
    %v1164 = vmul.f32 %v1155, %v1159
    %v1165 = vmul.f32 %v1156, %v1159
    %v1166 = vmul.f32 %v1157, %v1159
    %v1168 = vperm.slane %v1085, 0
    %v1170 = vadd.f32 %v1161, %v1168
    %v1171 = vadd.f32 %v1162, %v1168
    %v1172 = vadd.f32 %v1163, %v1168
    %v1173 = vadd.f32 %v1164, %v1168
    %v1174 = vadd.f32 %v1165, %v1168
    %v1175 = vadd.f32 %v1166, %v1168
    %1176 = vst.msk [vmem:[#allocation11] sm:$0xff] %vm336, %v1170
    %1177 = vst.msk [vmem:[#allocation11 + $0x8] sm:$0xff] %vm336, %v1171
    %1178 = vst.msk [vmem:[#allocation11 + $0x10] sm:$0xff] %vm336, %v1172
    %1179 = vst.msk [vmem:[#allocation11 + $0x18] sm:$0xff] %vm336, %v1173
    %1180 = vst.msk [vmem:[#allocation11 + $0x20] sm:$0xff] %vm336, %v1174
    %1181 = vst.msk [vmem:[#allocation11 + $0x28] sm:$0xff] %vm336, %v1175
    // Predicated region
    $region54: #{tpu_custom_call.1} parent=1 // pred_check
      _
    $region55: #{tpu_custom_call.1} parent=1 // pred_check_branch
      %1183 = sbr.rel (0) target = $region57
    $region56: #{tpu_custom_call.1} parent=1 // pred_region
      %1185 = vsyncadd [#allocation5], 0
      %s1186 = sshll.u32 [#allocation11], 4
      %s1187 = int_to_ptr.vmem [resolvable:$true] %s1186
      %s1188 = sshll.u32 %s9, 4
      %s1189 = int_to_ptr.hbm [resolvable:$true] %s1188
      %1194 = dma.vmem_to_hbm [thread:$0]  %s1187, 768, %s1189, [#allocation5], 128, 128, 8
    $region57: #{tpu_custom_call.1} parent=1 // pred_fallthru
      _
    // Predicated region
    $region58: #{tpu_custom_call.1} parent=1 // pred_check
      _
    $region59: #{tpu_custom_call.1} parent=1 // pred_check_branch
      %1196 = sbr.rel (0) target = $region61
    $region60: #{tpu_custom_call.1} parent=1 // pred_region
      %1198 = dma.done [#allocation5], 768
    $region61: #{tpu_custom_call.1} parent=1 // pred_fallthru
      _
    %1199 = vsyncpa [#allocation4], 1
    %1200 = vsyncpa [#allocation7], 1
    %1201 = vsyncpa [#allocation10], 1
    %1202 = vsyncpa [#allocation5], 1

</llo_original>
